<compile_context>
chip_gen: v5e
topology: v5e:2x2
jax: 0.10.0
libtpu: 0.0.40
codegen_flags: <defaults>
</compile_context>

<pallas_src>
import functools

import jax
import jax.numpy as jnp
from jax.experimental import pallas as pl
from jax.experimental.pallas import tpu as pltpu


def _equi_attention_kernel(v_ref, msg_ref, adj_ref, w_in_t_ref, w_out_t_ref,
                           out_ref):
    # v_ref      : (1, 3, N_kv, D)   equivariant features, xyz leading
    # msg_ref    : (1, N_q, N_kv, D) messages
    # adj_ref    : (1, N_q, N_kv)    dense adjacency (0/1, float)
    # w_in_t_ref : (D, D)            W_in^T  (so y = x @ w_in_t)
    # w_out_t_ref: (D, D)            W_out^T
    # out_ref    : (1, 3, N_q, D)
    msg = msg_ref[0].astype(jnp.float32)                    # (N_q, N_kv, D)
    adj = adj_ref[0]                                        # (N_q, N_kv)
    w_in_t = w_in_t_ref[...].astype(jnp.float32)            # (D, D)
    w_out_t = w_out_t_ref[...].astype(jnp.float32)          # (D, D)

    # adj_to_attn_mask: 0 where adjacent, -inf elsewhere (broadcast over lanes).
    bias = jnp.where(adj > 0.0, 0.0, -jnp.inf).astype(jnp.float32)  # (N_q, N_kv)
    logits = msg + bias[:, :, None]                          # (N_q, N_kv, D)

    # Per-(q, d)-channel softmax over the kv axis.
    row_max = jnp.max(logits, axis=1, keepdims=True)         # (N_q, 1, D)
    p = jnp.exp(logits - row_max)                            # (N_q, N_kv, D)
    denom = jnp.sum(p, axis=1, keepdims=True)                # (N_q, 1, D)
    attn = p * pl.reciprocal(denom)                          # (N_q, N_kv, D)

    # L2 norm of each attention distribution (per q, per channel d).
    w_qd = jnp.sqrt(jnp.sum(attn * attn, axis=1))            # (N_q, D)

    # For each xyz component: project, attend, scale, out-project, store.
    for x in range(3):
        vx = v_ref[0, x].astype(jnp.float32)                 # (N_kv, D)
        proj_x = jnp.dot(vx, w_in_t,
                         preferred_element_type=jnp.float32)  # (N_kv, D)
        # attn_out[q, d] = sum_k attn[q, k, d] * proj_x[k, d]
        ax = jnp.sum(attn * proj_x[None, :, :], axis=1)       # (N_q, D)
        ax = ax * w_qd
        out_x = jnp.dot(ax, w_out_t,
                        preferred_element_type=jnp.float32)   # (N_q, D)
        out_ref[0, x] = out_x.astype(out_ref.dtype)


def equi_attention(v_equi, messages, adj_matrix, w_in, w_out, *, eps=1e-5):
    """Pallas implementation of _EquiAttention.forward (dense adjacency).

    Args:
      v_equi    : [B, N_kv, 3, d_equi] float32
      messages  : [B, N_q, N_kv, d_equi] float32
      adj_matrix: [B, N_q, N_kv] (nonzero = edge)
      w_in      : [d_equi, d_equi]  torch Linear weight (out, in), no bias
      w_out     : [d_equi, d_equi]  torch Linear weight (out, in), no bias
      eps       : kept for signature parity; unused in the torch forward.
    Returns:
      [B, N_q, 3, d_equi] float32
    """
    del eps  # stored by the torch module but never used in forward()
    B, N_kv, three, D = v_equi.shape
    _, N_q, N_kv2, D2 = messages.shape
    assert three == 3 and N_kv2 == N_kv and D2 == D

    # Host-side layout plumbing: xyz axis off sublanes, weights pre-transposed.
    v_t = jnp.transpose(v_equi, (0, 2, 1, 3))                # [B, 3, N_kv, D]
    w_in_t = jnp.transpose(w_in)                              # y = x @ W^T
    w_out_t = jnp.transpose(w_out)
    adj_f = adj_matrix.astype(jnp.float32)

    grid_spec = pltpu.PrefetchScalarGridSpec(
        num_scalar_prefetch=0,
        grid=(B,),
        in_specs=[
            pl.BlockSpec((1, 3, N_kv, D), lambda b: (b, 0, 0, 0)),   # v (xyz-major)
            pl.BlockSpec((1, N_q, N_kv, D), lambda b: (b, 0, 0, 0)),  # messages
            pl.BlockSpec((1, N_q, N_kv), lambda b: (b, 0, 0)),        # adjacency
            pl.BlockSpec((D, D), lambda b: (0, 0)),                   # W_in^T
            pl.BlockSpec((D, D), lambda b: (0, 0)),                   # W_out^T
        ],
        out_specs=pl.BlockSpec((1, 3, N_q, D), lambda b: (b, 0, 0, 0)),
    )

    out_t = pl.pallas_call(
        _equi_attention_kernel,
        out_shape=jax.ShapeDtypeStruct((B, 3, N_q, D), messages.dtype),
        grid_spec=grid_spec,
        compiler_params=pltpu.CompilerParams(
            dimension_semantics=("parallel",)),
    )(v_t, messages, adj_f, w_in_t, w_out_t)

    return jnp.transpose(out_t, (0, 2, 1, 3))                 # [B, N_q, 3, D]


def equi_attention_reference(v_equi, messages, adj_matrix, w_in, w_out):
    """Pure-JAX reference mirroring the PyTorch forward exactly."""
    hp = jax.lax.Precision.HIGHEST
    proj = jnp.einsum('bkxe,de->bkxd', v_equi, w_in, precision=hp)
    bias = jnp.where(adj_matrix > 0, 0.0, -jnp.inf).astype(messages.dtype)
    logits = messages + bias[:, :, :, None]
    attn = jax.nn.softmax(logits, axis=2)
    attn_out = jnp.einsum('bqkd,bkxd->bqxd', attn, proj, precision=hp)
    weights = jnp.sqrt(jnp.sum(attn * attn, axis=2))          # [B, N_q, D]
    attn_out = attn_out * weights[:, :, None, :]
    return jnp.einsum('bqxe,de->bqxd', attn_out, w_out, precision=hp)


if __name__ == "__main__":
    B, N_Q, N_KV, D_EQUI = 2, 16, 16, 128   # lane-dense d_equi, N multiple of 8

    key = jax.random.PRNGKey(0)
    k_v, k_m, k_adj, k_win, k_wout = jax.random.split(key, 5)

    v_equi = jax.random.normal(k_v, (B, N_KV, 3, D_EQUI), dtype=jnp.float32)
    messages = jax.random.normal(k_m, (B, N_Q, N_KV, D_EQUI), dtype=jnp.float32)

    # Deterministic-from-seed adjacency; guarantee every query has >= 1
    # neighbour so softmax rows are never all -inf (same hazard exists in torch).
    adj = (jax.random.uniform(k_adj, (B, N_Q, N_KV)) > 0.5).astype(jnp.float32)
    adj = jnp.maximum(adj, jnp.eye(N_Q, N_KV, dtype=jnp.float32)[None])

    scale = 1.0 / (D_EQUI ** 0.5)
    w_in = jax.random.normal(k_win, (D_EQUI, D_EQUI), dtype=jnp.float32) * scale
    w_out = jax.random.normal(k_wout, (D_EQUI, D_EQUI), dtype=jnp.float32) * scale

    out = equi_attention(v_equi, messages, adj, w_in, w_out)
    out = jax.block_until_ready(out)

    ref = equi_attention_reference(v_equi, messages, adj, w_in, w_out)
    assert out.shape == (B, N_Q, 3, D_EQUI)
    assert jnp.allclose(out, ref, atol=1e-4, rtol=1e-4), "mismatch vs reference"

    print("KERNEL_OK")
</pallas_src>

<mosaic_0001>
module attributes {stable_mosaic.version = 11 : i64} {
  func.func @_equi_attention_kernel(%arg0: i32, %arg1: memref<1x3x16x128xf32, #tpu.memory_space<vmem>>, %arg2: memref<1x16x16x128xf32, #tpu.memory_space<vmem>>, %arg3: memref<1x16x16xf32, #tpu.memory_space<vmem>>, %arg4: memref<128x128xf32, #tpu.memory_space<vmem>>, %arg5: memref<128x128xf32, #tpu.memory_space<vmem>>, %arg6: memref<1x3x16x128xf32, #tpu.memory_space<vmem>>) attributes {dimension_semantics = [#tpu.dimension_semantics<parallel>], iteration_bounds = array<i64: 2>, scalar_prefetch = 0 : i64, scratch_operands = 0 : i64, tpu.core_type = #tpu.core_type<tc>, window_params = [{transform_indices = @transform_0, window_bounds = array<i64: 1, 3, 16, 128>}, {transform_indices = @transform_1, window_bounds = array<i64: 1, 16, 16, 128>}, {transform_indices = @transform_2, window_bounds = array<i64: 1, 16, 16>}, {pipeline_mode = #tpu.pipeline_mode<synchronous>, transform_indices = @transform_3, window_bounds = array<i64: 128, 128>}, {pipeline_mode = #tpu.pipeline_mode<synchronous>, transform_indices = @transform_4, window_bounds = array<i64: 128, 128>}, {transform_indices = @transform_5, window_bounds = array<i64: 1, 3, 16, 128>}]} {
    %c0 = arith.constant 0 : index
    %c0_0 = arith.constant 0 : index
    %c0_1 = arith.constant 0 : index
    %c0_2 = arith.constant 0 : index
    %0 = vector.load %arg2[%c0, %c0_0, %c0_1, %c0_2] : memref<1x16x16x128xf32, #tpu.memory_space<vmem>>, vector<1x16x16x128xf32>
    %1 = vector.shape_cast %0 : vector<1x16x16x128xf32> to vector<16x16x128xf32>
    %c0_3 = arith.constant 0 : index
    %c0_4 = arith.constant 0 : index
    %c0_5 = arith.constant 0 : index
    %2 = vector.load %arg3[%c0_3, %c0_4, %c0_5] : memref<1x16x16xf32, #tpu.memory_space<vmem>>, vector<1x16x16xf32>
    %3 = vector.shape_cast %2 : vector<1x16x16xf32> to vector<16x16xf32>
    %c0_6 = arith.constant 0 : index
    %c0_7 = arith.constant 0 : index
    %4 = vector.load %arg4[%c0_6, %c0_7] : memref<128x128xf32, #tpu.memory_space<vmem>>, vector<128x128xf32>
    %c0_8 = arith.constant 0 : index
    %c0_9 = arith.constant 0 : index
    %5 = vector.load %arg5[%c0_8, %c0_9] : memref<128x128xf32, #tpu.memory_space<vmem>>, vector<128x128xf32>
    %cst = arith.constant 0.000000e+00 : f32
    %6 = vector.broadcast %cst : f32 to vector<16x16xf32>
    %7 = arith.cmpf ogt, %3, %6 : vector<16x16xf32>
    %cst_10 = arith.constant 0.000000e+00 : f32
    %cst_11 = arith.constant 0xFF800000 : f32
    %8 = vector.broadcast %cst_10 : f32 to vector<16x16xf32>
    %9 = vector.broadcast %cst_11 : f32 to vector<16x16xf32>
    %10 = arith.select %7, %8, %9 : vector<16x16xi1>, vector<16x16xf32>
    %11 = vector.shape_cast %10 : vector<16x16xf32> to vector<16x16x1xf32>
    %12 = vector.broadcast %11 : vector<16x16x1xf32> to vector<16x16x128xf32>
    %13 = arith.addf %1, %12 : vector<16x16x128xf32>
    %cst_12 = arith.constant dense<0xFF800000> : vector<16x128xf32>
    %14 = vector.multi_reduction <maximumf>, %13, %cst_12 [1] : vector<16x16x128xf32> to vector<16x128xf32>
    %15 = vector.shape_cast %14 : vector<16x128xf32> to vector<16x1x128xf32>
    %16 = vector.broadcast %15 : vector<16x1x128xf32> to vector<16x16x128xf32>
    %17 = arith.subf %13, %16 : vector<16x16x128xf32>
    %18 = math.exp %17 : vector<16x16x128xf32>
    %cst_13 = arith.constant dense<0.000000e+00> : vector<16x128xf32>
    %19 = vector.multi_reduction <add>, %18, %cst_13 [1] : vector<16x16x128xf32> to vector<16x128xf32>
    %20 = vector.shape_cast %19 : vector<16x128xf32> to vector<16x1x128xf32>
    %21 = tpu.reciprocal %20 : vector<16x1x128xf32> -> vector<16x1x128xf32>
    %22 = vector.broadcast %21 : vector<16x1x128xf32> to vector<16x16x128xf32>
    %23 = arith.mulf %18, %22 : vector<16x16x128xf32>
    %24 = arith.mulf %23, %23 : vector<16x16x128xf32>
    %cst_14 = arith.constant dense<0.000000e+00> : vector<16x128xf32>
    %25 = vector.multi_reduction <add>, %24, %cst_14 [1] : vector<16x16x128xf32> to vector<16x128xf32>
    %26 = math.sqrt %25 : vector<16x128xf32>
    %c0_15 = arith.constant 0 : index
    %c0_16 = arith.constant 0 : index
    %c0_17 = arith.constant 0 : index
    %c0_18 = arith.constant 0 : index
    %27 = vector.load %arg1[%c0_15, %c0_16, %c0_17, %c0_18] : memref<1x3x16x128xf32, #tpu.memory_space<vmem>>, vector<1x1x16x128xf32>
    %28 = vector.shape_cast %27 : vector<1x1x16x128xf32> to vector<16x128xf32>
    %cst_19 = arith.constant dense<0.000000e+00> : vector<16x128xf32>
    %29 = tpu.matmul %28, %4, %cst_19 {dimension_numbers = #tpu.dot_dimension_numbers<[1], [0], [0], [1], [0, 0, 1, 1], [], []>} : vector<16x128xf32>, vector<128x128xf32>, vector<16x128xf32> -> vector<16x128xf32>
    %30 = vector.shape_cast %29 : vector<16x128xf32> to vector<1x16x128xf32>
    %31 = vector.broadcast %30 : vector<1x16x128xf32> to vector<16x16x128xf32>
    %32 = arith.mulf %23, %31 : vector<16x16x128xf32>
    %cst_20 = arith.constant dense<0.000000e+00> : vector<16x128xf32>
    %33 = vector.multi_reduction <add>, %32, %cst_20 [1] : vector<16x16x128xf32> to vector<16x128xf32>
    %34 = arith.mulf %33, %26 : vector<16x128xf32>
    %cst_21 = arith.constant dense<0.000000e+00> : vector<16x128xf32>
    %35 = tpu.matmul %34, %5, %cst_21 {dimension_numbers = #tpu.dot_dimension_numbers<[1], [0], [0], [1], [0, 0, 1, 1], [], []>} : vector<16x128xf32>, vector<128x128xf32>, vector<16x128xf32> -> vector<16x128xf32>
    %c0_22 = arith.constant 0 : index
    %c0_23 = arith.constant 0 : index
    %c0_24 = arith.constant 0 : index
    %c0_25 = arith.constant 0 : index
    %36 = vector.load %arg6[%c0_22, %c0_23, %c0_24, %c0_25] : memref<1x3x16x128xf32, #tpu.memory_space<vmem>>, vector<1x1x16x128xf32>
    %37 = vector.shape_cast %36 : vector<1x1x16x128xf32> to vector<16x128xf32>
    %38 = vector.shape_cast %35 : vector<16x128xf32> to vector<1x1x16x128xf32>
    tpu.vector_store %arg6[%c0_22, %c0_23, %c0_24, %c0_25], %38 {strides = array<i32>} : memref<1x3x16x128xf32, #tpu.memory_space<vmem>>, vector<1x1x16x128xf32>,
    %c0_26 = arith.constant 0 : index
    %c1 = arith.constant 1 : index
    %c0_27 = arith.constant 0 : index
    %c0_28 = arith.constant 0 : index
    %39 = vector.load %arg1[%c0_26, %c1, %c0_27, %c0_28] : memref<1x3x16x128xf32, #tpu.memory_space<vmem>>, vector<1x1x16x128xf32>
    %40 = vector.shape_cast %39 : vector<1x1x16x128xf32> to vector<16x128xf32>
    %cst_29 = arith.constant dense<0.000000e+00> : vector<16x128xf32>
    %41 = tpu.matmul %40, %4, %cst_29 {dimension_numbers = #tpu.dot_dimension_numbers<[1], [0], [0], [1], [0, 0, 1, 1], [], []>} : vector<16x128xf32>, vector<128x128xf32>, vector<16x128xf32> -> vector<16x128xf32>
    %42 = vector.shape_cast %41 : vector<16x128xf32> to vector<1x16x128xf32>
    %43 = vector.broadcast %42 : vector<1x16x128xf32> to vector<16x16x128xf32>
    %44 = arith.mulf %23, %43 : vector<16x16x128xf32>
    %cst_30 = arith.constant dense<0.000000e+00> : vector<16x128xf32>
    %45 = vector.multi_reduction <add>, %44, %cst_30 [1] : vector<16x16x128xf32> to vector<16x128xf32>
    %46 = arith.mulf %45, %26 : vector<16x128xf32>
    %cst_31 = arith.constant dense<0.000000e+00> : vector<16x128xf32>
    %47 = tpu.matmul %46, %5, %cst_31 {dimension_numbers = #tpu.dot_dimension_numbers<[1], [0], [0], [1], [0, 0, 1, 1], [], []>} : vector<16x128xf32>, vector<128x128xf32>, vector<16x128xf32> -> vector<16x128xf32>
    %c0_32 = arith.constant 0 : index
    %c1_33 = arith.constant 1 : index
    %c0_34 = arith.constant 0 : index
    %c0_35 = arith.constant 0 : index
    %48 = vector.load %arg6[%c0_32, %c1_33, %c0_34, %c0_35] : memref<1x3x16x128xf32, #tpu.memory_space<vmem>>, vector<1x1x16x128xf32>
    %49 = vector.shape_cast %48 : vector<1x1x16x128xf32> to vector<16x128xf32>
    %50 = vector.shape_cast %47 : vector<16x128xf32> to vector<1x1x16x128xf32>
    tpu.vector_store %arg6[%c0_32, %c1_33, %c0_34, %c0_35], %50 {strides = array<i32>} : memref<1x3x16x128xf32, #tpu.memory_space<vmem>>, vector<1x1x16x128xf32>,
    %c0_36 = arith.constant 0 : index
    %c2 = arith.constant 2 : index
    %c0_37 = arith.constant 0 : index
    %c0_38 = arith.constant 0 : index
    %51 = vector.load %arg1[%c0_36, %c2, %c0_37, %c0_38] : memref<1x3x16x128xf32, #tpu.memory_space<vmem>>, vector<1x1x16x128xf32>
    %52 = vector.shape_cast %51 : vector<1x1x16x128xf32> to vector<16x128xf32>
    %cst_39 = arith.constant dense<0.000000e+00> : vector<16x128xf32>
    %53 = tpu.matmul %52, %4, %cst_39 {dimension_numbers = #tpu.dot_dimension_numbers<[1], [0], [0], [1], [0, 0, 1, 1], [], []>} : vector<16x128xf32>, vector<128x128xf32>, vector<16x128xf32> -> vector<16x128xf32>
    %54 = vector.shape_cast %53 : vector<16x128xf32> to vector<1x16x128xf32>
    %55 = vector.broadcast %54 : vector<1x16x128xf32> to vector<16x16x128xf32>
    %56 = arith.mulf %23, %55 : vector<16x16x128xf32>
    %cst_40 = arith.constant dense<0.000000e+00> : vector<16x128xf32>
    %57 = vector.multi_reduction <add>, %56, %cst_40 [1] : vector<16x16x128xf32> to vector<16x128xf32>
    %58 = arith.mulf %57, %26 : vector<16x128xf32>
    %cst_41 = arith.constant dense<0.000000e+00> : vector<16x128xf32>
    %59 = tpu.matmul %58, %5, %cst_41 {dimension_numbers = #tpu.dot_dimension_numbers<[1], [0], [0], [1], [0, 0, 1, 1], [], []>} : vector<16x128xf32>, vector<128x128xf32>, vector<16x128xf32> -> vector<16x128xf32>
    %c0_42 = arith.constant 0 : index
    %c2_43 = arith.constant 2 : index
    %c0_44 = arith.constant 0 : index
    %c0_45 = arith.constant 0 : index
    %60 = vector.load %arg6[%c0_42, %c2_43, %c0_44, %c0_45] : memref<1x3x16x128xf32, #tpu.memory_space<vmem>>, vector<1x1x16x128xf32>
    %61 = vector.shape_cast %60 : vector<1x1x16x128xf32> to vector<16x128xf32>
    %62 = vector.shape_cast %59 : vector<16x128xf32> to vector<1x1x16x128xf32>
    tpu.vector_store %arg6[%c0_42, %c2_43, %c0_44, %c0_45], %62 {strides = array<i32>} : memref<1x3x16x128xf32, #tpu.memory_space<vmem>>, vector<1x1x16x128xf32>,
    return
  }
  func.func @transform_0(%arg0: i32) -> (i32, i32, i32, i32) {
    %c0_i32 = arith.constant 0 : i32
    %c0_i32_0 = arith.constant 0 : i32
    %c0_i32_1 = arith.constant 0 : i32
    %c0_i32_2 = arith.constant 0 : i32
    return %arg0, %c0_i32, %c0_i32_0, %c0_i32_1 : i32, i32, i32, i32
  }
  func.func @transform_1(%arg0: i32) -> (i32, i32, i32, i32) {
    %c0_i32 = arith.constant 0 : i32
    %c0_i32_0 = arith.constant 0 : i32
    %c0_i32_1 = arith.constant 0 : i32
    %c0_i32_2 = arith.constant 0 : i32
    return %arg0, %c0_i32, %c0_i32_0, %c0_i32_1 : i32, i32, i32, i32
  }
  func.func @transform_2(%arg0: i32) -> (i32, i32, i32) {
    %c0_i32 = arith.constant 0 : i32
    %c0_i32_0 = arith.constant 0 : i32
    %c0_i32_1 = arith.constant 0 : i32
    return %arg0, %c0_i32, %c0_i32_0 : i32, i32, i32
  }
  func.func @transform_3(%arg0: i32) -> (i32, i32) {
    %c0_i32 = arith.constant 0 : i32
    %c0_i32_0 = arith.constant 0 : i32
    %c0_i32_1 = arith.constant 0 : i32
    return %c0_i32, %c0_i32_0 : i32, i32
  }
  func.func @transform_4(%arg0: i32) -> (i32, i32) {
    %c0_i32 = arith.constant 0 : i32
    %c0_i32_0 = arith.constant 0 : i32
    %c0_i32_1 = arith.constant 0 : i32
    return %c0_i32, %c0_i32_0 : i32, i32
  }
  func.func @transform_5(%arg0: i32) -> (i32, i32, i32, i32) {
    %c0_i32 = arith.constant 0 : i32
    %c0_i32_0 = arith.constant 0 : i32
    %c0_i32_1 = arith.constant 0 : i32
    %c0_i32_2 = arith.constant 0 : i32
    return %arg0, %c0_i32, %c0_i32_0, %c0_i32_1 : i32, i32, i32, i32
  }
}

</mosaic_0001>

<llo_original>
// kernel: tpu_custom_call.1
$region0: #{tpu_custom_call.1}
  #allocation0 [shape = 'u32[]', space=smem, size = 0x4, offset = 0x4, fixed_abs, tag = 'smem constant byte address 0x4 - core index']
  #allocation1 [shape = 'u32[72,128]{1,0:T(1,128)}', space=vmem, size = 0x9000, scoped, tag = 'internal scratch']
  %s0 = inlined_call_operand.hbm [shape: f32[2,3,16,128], index: 0, kind: input, shape index: {}]
  %s1 = inlined_call_operand.hbm [shape: f32[2,16,16,128], index: 1, kind: input, shape index: {}]
  %s2 = inlined_call_operand.hbm [shape: f32[2,16,16], index: 2, kind: input, shape index: {}]
  %s3 = inlined_call_operand.hbm [shape: f32[128,128], index: 3, kind: input, shape index: {}]
  %s4 = inlined_call_operand.hbm [shape: f32[128,128], index: 4, kind: input, shape index: {}]
  %s5 = inlined_call_operand.hbm [shape: f32[2,3,16,128], index: 5, kind: output, shape index: {}]
  %s6 = sld [smem:[#allocation0]]
  $region73: #{tpu_custom_call.1} parent=0
    _
  %s8 = ssub.s32 1, %s6
  %s9 = scalar_select 0, %s8, %s6
  $region1: #{tpu_custom_call.1} parent=0
    #allocation2 [shape = 'u8[49152]{0}', space=vmem, size = 0xc000, scoped, tag = 'input window, operand 0']
    #allocation3 [shape = 's32[2]{0}', space=sflag, size = 0x8, scoped, tag = 'scoped memory for tpu_custom_call.1']
    #allocation4 [shape = 's32[2]{0}', space=sflag, size = 0x8, scoped, tag = 'scoped memory for tpu_custom_call.1']
    #allocation5 [shape = 'u8[262144]{0}', space=vmem, size = 0x40000, scoped, tag = 'input window, operand 1']
    #allocation6 [shape = 's32[2]{0}', space=sflag, size = 0x8, scoped, tag = 'scoped memory for tpu_custom_call.1']
    #allocation7 [shape = 'u8[16384]{0}', space=vmem, size = 0x4000, scoped, tag = 'input window, operand 2']
    #allocation8 [shape = 'u8[65536]{0}', space=vmem, size = 0x10000, scoped, tag = 'input window, operand 3, single buffered']
    #allocation9 [shape = 's32[1]{0}', space=sflag, size = 0x4, scoped, tag = 'scoped memory for tpu_custom_call.1']
    #allocation10 [shape = 'u8[65536]{0}', space=vmem, size = 0x10000, scoped, tag = 'input window, operand 4, single buffered']
    #allocation11 [shape = 'u8[49152]{0}', space=vmem, size = 0xc000, scoped, tag = 'output window, operand 0']
    %10 = vsyncpa [#allocation3], 0
    %s11 = scalar_lea.sflag [#allocation3], 1
    %12 = vsyncpa %s11, 0
    %13 = vsyncpa [#allocation6], 0
    %s14 = scalar_lea.sflag [#allocation6], 1
    %15 = vsyncpa %s14, 0
    %16 = vsyncpa [#allocation9], 0
    %17 = vsyncpa [#allocation4], 0
    %s18 = scalar_lea.sflag [#allocation4], 1
    %19 = vsyncpa %s18, 0
    loop: start=0, step=1, limit=4
    $region2: #{tpu_custom_call.1} parent=1 // loop_pre_header
      _
    $region3: #{tpu_custom_call.1} parent=1 // loop_header
      %s21 = sphi 0, %s25
      %p22 = scmp.ge.s32.totalorder %s21, 4
      %s31 = sphi 0, %s33
      %s34 = sphi 0, %s31
      %s35 = sphi 0, %s34
      %s51 = sphi 0, %s35
      %s57 = sphi 0, %s59
      %s60 = sphi 0, %s57
      %s61 = sphi 0, %s60
      %s77 = sphi 0, %s61
      %s83 = sphi 0, %s85
      %s86 = sphi 0, %s83
      %s87 = sphi 0, %s86
      %s103 = sphi 0, %s87
      %s107 = sphi 0, %s107
      %s109 = sphi 0, %s107
      %s110 = sphi 0, %s109
      %s124 = sphi 0, %s110
      %s128 = sphi 0, %s128
      %s130 = sphi 0, %s128
      %s131 = sphi 0, %s130
      %s145 = sphi 0, %s131
      %s151 = sphi 0, %s153
      %s154 = sphi 0, %s151
      %s155 = sphi 0, %s154
      %s171 = sphi 0, %s155
    $region4: #{tpu_custom_call.1} parent=1 // loop_header_branch
      %24 = sbr.rel (%p22) target = $region8
    $region5: #{tpu_custom_call.1} parent=1 // loop_body
      %s26 = ssub.s32 %s21, 1
      %s27 = ssub.s32 %s21, 2
      %s28 = sadd.s32 %s21, 1
      %s29 = ssub.s32 %s21, %s28
      %p30 = scmp.eq.s32.totalorder %s29, 0
      %s32 = sadd.s32 %s31, 1
      %s33 = scalar_select %p30, %s31, %s32
      %p36 = pneg %p30
      %p37 = scmp.eq.s32.totalorder %s21, 1
      %p38 = por %p36, %p37
      %p39 = scmp.ne.s32.totalorder %s31, %s34
      %p40 = scmp.eq.s32.totalorder %s21, 0
      %p41 = por %p39, %p40
      %p42 = scmp.ne.s32.totalorder %s31, %s34
      %p43 = scmp.eq.s32.totalorder %s26, 1
      %p44 = por %p42, %p43
      %p45 = scmp.ne.s32.totalorder %s34, %s35
      %p46 = scmp.eq.s32.totalorder %s26, 0
      %p47 = por %p45, %p46
      %p48 = scmp.ne.s32.totalorder %s34, %s35
      %p49 = scmp.eq.s32.totalorder %s27, 1
      %p50 = por %p48, %p49
      %p52 = scmp.ne.s32.totalorder %s35, %s51
      %p53 = scmp.eq.s32.totalorder %s27, 0
      %p54 = por %p52, %p53
      %s55 = ssub.s32 %s21, %s28
      %p56 = scmp.eq.s32.totalorder %s55, 0
      %s58 = sadd.s32 %s57, 1
      %s59 = scalar_select %p56, %s57, %s58
      %p62 = pneg %p56
      %p63 = scmp.eq.s32.totalorder %s21, 1
      %p64 = por %p62, %p63
      %p65 = scmp.ne.s32.totalorder %s57, %s60
      %p66 = scmp.eq.s32.totalorder %s21, 0
      %p67 = por %p65, %p66
      %p68 = scmp.ne.s32.totalorder %s57, %s60
      %p69 = scmp.eq.s32.totalorder %s26, 1
      %p70 = por %p68, %p69
      %p71 = scmp.ne.s32.totalorder %s60, %s61
      %p72 = scmp.eq.s32.totalorder %s26, 0
      %p73 = por %p71, %p72
      %p74 = scmp.ne.s32.totalorder %s60, %s61
      %p75 = scmp.eq.s32.totalorder %s27, 1
      %p76 = por %p74, %p75
      %p78 = scmp.ne.s32.totalorder %s61, %s77
      %p79 = scmp.eq.s32.totalorder %s27, 0
      %p80 = por %p78, %p79
      %s81 = ssub.s32 %s21, %s28
      %p82 = scmp.eq.s32.totalorder %s81, 0
      %s84 = sadd.s32 %s83, 1
      %s85 = scalar_select %p82, %s83, %s84
      %p88 = pneg %p82
      %p89 = scmp.eq.s32.totalorder %s21, 1
      %p90 = por %p88, %p89
      %p91 = scmp.ne.s32.totalorder %s83, %s86
      %p92 = scmp.eq.s32.totalorder %s21, 0
      %p93 = por %p91, %p92
      %p94 = scmp.ne.s32.totalorder %s83, %s86
      %p95 = scmp.eq.s32.totalorder %s26, 1
      %p96 = por %p94, %p95
      %p97 = scmp.ne.s32.totalorder %s86, %s87
      %p98 = scmp.eq.s32.totalorder %s26, 0
      %p99 = por %p97, %p98
      %p100 = scmp.ne.s32.totalorder %s86, %s87
      %p101 = scmp.eq.s32.totalorder %s27, 1
      %p102 = por %p100, %p101
      %p104 = scmp.ne.s32.totalorder %s87, %s103
      %p105 = scmp.eq.s32.totalorder %s27, 0
      %p106 = por %p104, %p105
      %s108 = sadd.s32 %s107, 1
      %p111 = scmp.eq.s32.totalorder %s21, 1
      %p112 = scmp.ne.s32.totalorder %s107, %s109
      %p113 = scmp.eq.s32.totalorder %s21, 0
      %p114 = por %p112, %p113
      %p115 = scmp.ne.s32.totalorder %s107, %s109
      %p116 = scmp.eq.s32.totalorder %s26, 1
      %p117 = por %p115, %p116
      %p118 = scmp.ne.s32.totalorder %s109, %s110
      %p119 = scmp.eq.s32.totalorder %s26, 0
      %p120 = por %p118, %p119
      %p121 = scmp.ne.s32.totalorder %s109, %s110
      %p122 = scmp.eq.s32.totalorder %s27, 1
      %p123 = por %p121, %p122
      %p125 = scmp.ne.s32.totalorder %s110, %s124
      %p126 = scmp.eq.s32.totalorder %s27, 0
      %p127 = por %p125, %p126
      %s129 = sadd.s32 %s128, 1
      %p132 = scmp.eq.s32.totalorder %s21, 1
      %p133 = scmp.ne.s32.totalorder %s128, %s130
      %p134 = scmp.eq.s32.totalorder %s21, 0
      %p135 = por %p133, %p134
      %p136 = scmp.ne.s32.totalorder %s128, %s130
      %p137 = scmp.eq.s32.totalorder %s26, 1
      %p138 = por %p136, %p137
      %p139 = scmp.ne.s32.totalorder %s130, %s131
      %p140 = scmp.eq.s32.totalorder %s26, 0
      %p141 = por %p139, %p140
      %p142 = scmp.ne.s32.totalorder %s130, %s131
      %p143 = scmp.eq.s32.totalorder %s27, 1
      %p144 = por %p142, %p143
      %p146 = scmp.ne.s32.totalorder %s131, %s145
      %p147 = scmp.eq.s32.totalorder %s27, 0
      %p148 = por %p146, %p147
      %s149 = ssub.s32 %s21, %s28
      %p150 = scmp.eq.s32.totalorder %s149, 0
      %s152 = sadd.s32 %s151, 1
      %s153 = scalar_select %p150, %s151, %s152
      %p156 = pneg %p150
      %p157 = scmp.eq.s32.totalorder %s21, 1
      %p158 = por %p156, %p157
      %p159 = scmp.ne.s32.totalorder %s151, %s154
      %p160 = scmp.eq.s32.totalorder %s21, 0
      %p161 = por %p159, %p160
      %p162 = scmp.ne.s32.totalorder %s151, %s154
      %p163 = scmp.eq.s32.totalorder %s26, 1
      %p164 = por %p162, %p163
      %p165 = scmp.ne.s32.totalorder %s154, %s155
      %p166 = scmp.eq.s32.totalorder %s26, 0
      %p167 = por %p165, %p166
      %p168 = scmp.ne.s32.totalorder %s154, %s155
      %p169 = scmp.eq.s32.totalorder %s27, 1
      %p170 = por %p168, %p169
      %p172 = scmp.ne.s32.totalorder %s155, %s171
      %p173 = scmp.eq.s32.totalorder %s27, 0
      %p174 = por %p172, %p173
      %p175 = scmp.le.s32.totalorder 1, %s21
      %p176 = scmp.lt.s32.totalorder %s21, 3
      %p177 = pnand %p175, %p176
      %p178 = pneg %p177
      // Predicated region
      $region9: #{tpu_custom_call.1} parent=5 // pred_check
        _
      $region10: #{tpu_custom_call.1} parent=5 // pred_check_branch
        %180 = sbr.rel (%p177) target = $region12
      $region11: #{tpu_custom_call.1} parent=5 // pred_region
        %s181 = ssub.s32 %s21, 1
        // Predicated region
        $region13: #{tpu_custom_call.1} parent=11 // pred_check
          %p182 = pneg %p120
        $region14: #{tpu_custom_call.1} parent=11 // pred_check_branch
          %184 = sbr.rel (%p182) target = $region16
        $region15: #{tpu_custom_call.1} parent=11 // pred_region
          %186 = vsyncadd [#allocation9], 0
          %s187 = sshll.u32 %s3, 4
          %s188 = int_to_ptr.hbm [resolvable:$true] %s187
          %s189 = sshll.u32 [#allocation8], 4
          %s190 = int_to_ptr.vmem [resolvable:$true] %s189
          %195 = dma.hbm_to_vmem [thread:$0]  %s188, 2048, %s190, [#allocation9], 128, 128, 8
        $region16: #{tpu_custom_call.1} parent=11 // pred_fallthru
          _
        // Predicated region
        $region17: #{tpu_custom_call.1} parent=11 // pred_check
          %p196 = pneg %p141
        $region18: #{tpu_custom_call.1} parent=11 // pred_check_branch
          %198 = sbr.rel (%p196) target = $region20
        $region19: #{tpu_custom_call.1} parent=11 // pred_region
          %200 = vsyncadd [#allocation9], 0
          %s201 = sshll.u32 %s4, 4
          %s202 = int_to_ptr.hbm [resolvable:$true] %s201
          %s203 = sshll.u32 [#allocation10], 4
          %s204 = int_to_ptr.vmem [resolvable:$true] %s203
          %209 = dma.hbm_to_vmem [thread:$0]  %s202, 2048, %s204, [#allocation9], 128, 128, 8
        $region20: #{tpu_custom_call.1} parent=11 // pred_fallthru
          _
      $region12: #{tpu_custom_call.1} parent=5 // pred_fallthru
        _
      %p210 = scmp.lt.s32.totalorder %s21, 2
      // Predicated region
      $region21: #{tpu_custom_call.1} parent=5 // pred_check
        %p211 = pneg %p210
      $region22: #{tpu_custom_call.1} parent=5 // pred_check_branch
        %213 = sbr.rel (%p211) target = $region24
      $region23: #{tpu_custom_call.1} parent=5 // pred_region
        // Predicated region
        $region25: #{tpu_custom_call.1} parent=23 // pred_check
          %p214 = pneg %p41
        $region26: #{tpu_custom_call.1} parent=23 // pred_check_branch
          %216 = sbr.rel (%p214) target = $region28
        $region27: #{tpu_custom_call.1} parent=23 // pred_region
          %s217 = sand.u32 %s31, 1
          %s218 = scalar_lea.sflag [#allocation3], %s217
          %s219 = sand.u32 %s31, 1
          %s220 = smul.addr %s219, 48
          %s221 = scalar_lea.vmem [#allocation2], %s220
          %223 = vsyncadd %s218, 0
          %s224 = smul.addr %s21, 6
          %s225 = smul.addr %s224, 8
          %s226 = scalar_lea.hbm %s0, %s225
          %s227 = sshll.u32 %s226, 4
          %s228 = int_to_ptr.hbm [resolvable:$true] %s227
          %s229 = sshll.u32 %s221, 4
          %s230 = int_to_ptr.vmem [resolvable:$true] %s229
          %235 = dma.hbm_to_vmem [thread:$0]  %s228, 768, %s230, %s218, 128, 128, 8
        $region28: #{tpu_custom_call.1} parent=23 // pred_fallthru
          _
        // Predicated region
        $region29: #{tpu_custom_call.1} parent=23 // pred_check
          %p236 = pneg %p67
        $region30: #{tpu_custom_call.1} parent=23 // pred_check_branch
          %238 = sbr.rel (%p236) target = $region32
        $region31: #{tpu_custom_call.1} parent=23 // pred_region
          %s239 = sand.u32 %s21, 1
          %s240 = scalar_lea.sflag [#allocation6], %s239
          %s241 = sand.u32 %s57, 1
          %s242 = smul.addr %s241, 256
          %s243 = scalar_lea.vmem [#allocation5], %s242
          %245 = vsyncadd %s240, 0
          %s246 = smul.addr %s21, 32
          %s247 = smul.addr %s246, 8
          %s248 = scalar_lea.hbm %s1, %s247
          %s249 = sshll.u32 %s248, 4
          %s250 = int_to_ptr.hbm [resolvable:$true] %s249
          %s251 = sshll.u32 %s243, 4
          %s252 = int_to_ptr.vmem [resolvable:$true] %s251
          %257 = dma.hbm_to_vmem [thread:$0]  %s250, 4096, %s252, %s240, 128, 128, 8
        $region32: #{tpu_custom_call.1} parent=23 // pred_fallthru
          _
        // Predicated region
        $region33: #{tpu_custom_call.1} parent=23 // pred_check
          %p258 = pneg %p93
        $region34: #{tpu_custom_call.1} parent=23 // pred_check_branch
          %260 = sbr.rel (%p258) target = $region36
        $region35: #{tpu_custom_call.1} parent=23 // pred_region
          %s261 = sand.u32 %s21, 1
          %s262 = scalar_lea.sflag [#allocation6], %s261
          %s263 = sand.u32 %s83, 1
          %s264 = smul.addr %s263, 16
          %s265 = scalar_lea.vmem [#allocation7], %s264
          %267 = vsyncadd %s262, 0
          %s268 = smul.addr %s21, 2
          %s269 = smul.addr %s268, 8
          %s270 = scalar_lea.hbm %s2, %s269
          %s271 = sshll.u32 %s270, 4
          %s272 = int_to_ptr.hbm [resolvable:$true] %s271
          %s273 = sshll.u32 %s265, 4
          %s274 = int_to_ptr.vmem [resolvable:$true] %s273
          %279 = dma.hbm_to_vmem [thread:$0]  %s272, 256, %s274, %s262, 128, 128, 8
        $region36: #{tpu_custom_call.1} parent=23 // pred_fallthru
          _
      $region24: #{tpu_custom_call.1} parent=5 // pred_fallthru
        _
      %p280 = scmp.le.s32.totalorder 1, %s21
      %p281 = scmp.lt.s32.totalorder %s21, 3
      %p282 = pnand %p280, %p281
      %p283 = pneg %p282
      // Predicated region
      $region37: #{tpu_custom_call.1} parent=5 // pred_check
        _
      $region38: #{tpu_custom_call.1} parent=5 // pred_check_branch
        %285 = sbr.rel (%p282) target = $region40
      $region39: #{tpu_custom_call.1} parent=5 // pred_region
        %s286 = ssub.s32 %s21, 1
        %s287 = sand.u32 %s34, 1
        %s288 = scalar_lea.sflag [#allocation3], %s287
        %s289 = sand.u32 %s34, 1
        %s290 = smul.addr %s289, 48
        %s291 = scalar_lea.vmem [#allocation2], %s290
        // Predicated region
        $region41: #{tpu_custom_call.1} parent=39 // pred_check
          %p292 = pneg %p47
        $region42: #{tpu_custom_call.1} parent=39 // pred_check_branch
          %294 = sbr.rel (%p292) target = $region44
        $region43: #{tpu_custom_call.1} parent=39 // pred_region
          %296 = dma.done %s288, 768
        $region44: #{tpu_custom_call.1} parent=39 // pred_fallthru
          _
        %s297 = sand.u32 %s26, 1
        %s298 = scalar_lea.sflag [#allocation6], %s297
        %s299 = sand.u32 %s60, 1
        %s300 = smul.addr %s299, 256
        %s301 = scalar_lea.vmem [#allocation5], %s300
        // Predicated region
        $region45: #{tpu_custom_call.1} parent=39 // pred_check
          %p302 = pneg %p73
        $region46: #{tpu_custom_call.1} parent=39 // pred_check_branch
          %304 = sbr.rel (%p302) target = $region48
        $region47: #{tpu_custom_call.1} parent=39 // pred_region
          %306 = dma.done %s298, 4096
        $region48: #{tpu_custom_call.1} parent=39 // pred_fallthru
          _
        %s307 = sand.u32 %s26, 1
        %s308 = scalar_lea.sflag [#allocation6], %s307
        %s309 = sand.u32 %s86, 1
        %s310 = smul.addr %s309, 16
        %s311 = scalar_lea.vmem [#allocation7], %s310
        // Predicated region
        $region49: #{tpu_custom_call.1} parent=39 // pred_check
          %p312 = pneg %p99
        $region50: #{tpu_custom_call.1} parent=39 // pred_check_branch
          %314 = sbr.rel (%p312) target = $region52
        $region51: #{tpu_custom_call.1} parent=39 // pred_region
          %316 = dma.done %s308, 256
        $region52: #{tpu_custom_call.1} parent=39 // pred_fallthru
          _
        // Predicated region
        $region53: #{tpu_custom_call.1} parent=39 // pred_check
          %p317 = pneg %p120
        $region54: #{tpu_custom_call.1} parent=39 // pred_check_branch
          %319 = sbr.rel (%p317) target = $region56
        $region55: #{tpu_custom_call.1} parent=39 // pred_region
          %321 = dma.done [#allocation9], 2048
        $region56: #{tpu_custom_call.1} parent=39 // pred_fallthru
          _
        // Predicated region
        $region57: #{tpu_custom_call.1} parent=39 // pred_check
          %p322 = pneg %p141
        $region58: #{tpu_custom_call.1} parent=39 // pred_check_branch
          %324 = sbr.rel (%p322) target = $region60
        $region59: #{tpu_custom_call.1} parent=39 // pred_region
          %326 = dma.done [#allocation9], 2048
        $region60: #{tpu_custom_call.1} parent=39 // pred_fallthru
          _
        %s327 = sand.u32 %s34, 1
        %s328 = scalar_lea.sflag [#allocation3], %s327
        %s329 = sand.u32 %s34, 1
        %s330 = smul.addr %s329, 48
        %s331 = scalar_lea.vmem [#allocation2], %s330
        %p332 = pneg %p47
        %p333 = pneg %p44
        %s334 = sand.u32 %s26, 1
        %s335 = scalar_lea.sflag [#allocation6], %s334
        %s336 = sand.u32 %s60, 1
        %s337 = smul.addr %s336, 256
        %s338 = scalar_lea.vmem [#allocation5], %s337
        %p339 = pneg %p73
        %p340 = pneg %p70
        %s341 = sand.u32 %s26, 1
        %s342 = scalar_lea.sflag [#allocation6], %s341
        %s343 = sand.u32 %s86, 1
        %s344 = smul.addr %s343, 16
        %s345 = scalar_lea.vmem [#allocation7], %s344
        %p346 = pneg %p99
        %p347 = pneg %p96
        %p348 = pneg %p120
        %p349 = pneg %p117
        %p350 = pneg %p141
        %p351 = pneg %p138
        %p352 = pneg %p167
        %p353 = pneg %p164
        %s354 = sand.u32 %s154, 1
        %s355 = scalar_lea.sflag [#allocation4], %s354
        %s356 = sand.u32 %s154, 1
        %s357 = smul.addr %s356, 48
        %s358 = scalar_lea.vmem [#allocation11], %s357
        %v359 = vld [vmem:[%s301] sm:$0xff]
        %v360 = vld [vmem:[%s301 + $0x8] sm:$0xff]
        %v361 = vld [vmem:[%s301 + $0x10] sm:$0xff]
        %v362 = vld [vmem:[%s301 + $0x18] sm:$0xff]
        %v363 = vld [vmem:[%s301 + $0x20] sm:$0xff]
        %v364 = vld [vmem:[%s301 + $0x28] sm:$0xff]
        %v365 = vld [vmem:[%s301 + $0x30] sm:$0xff]
        %v366 = vld [vmem:[%s301 + $0x38] sm:$0xff]
        %v367 = vld [vmem:[%s301 + $0x40] sm:$0xff]
        %v368 = vld [vmem:[%s301 + $0x48] sm:$0xff]
        %v369 = vld [vmem:[%s301 + $0x50] sm:$0xff]
        %v370 = vld [vmem:[%s301 + $0x58] sm:$0xff]
        %v371 = vld [vmem:[%s301 + $0x60] sm:$0xff]
        %v372 = vld [vmem:[%s301 + $0x68] sm:$0xff]
        %v373 = vld [vmem:[%s301 + $0x70] sm:$0xff]
        %v374 = vld [vmem:[%s301 + $0x78] sm:$0xff]
        %v375 = vld [vmem:[%s301 + $0x80] sm:$0xff]
        %v376 = vld [vmem:[%s301 + $0x88] sm:$0xff]
        %v377 = vld [vmem:[%s301 + $0x90] sm:$0xff]
        %v378 = vld [vmem:[%s301 + $0x98] sm:$0xff]
        %v379 = vld [vmem:[%s301 + $0xa0] sm:$0xff]
        %v380 = vld [vmem:[%s301 + $0xa8] sm:$0xff]
        %v381 = vld [vmem:[%s301 + $0xb0] sm:$0xff]
        %v382 = vld [vmem:[%s301 + $0xb8] sm:$0xff]
        %v383 = vld [vmem:[%s301 + $0xc0] sm:$0xff]
        %v384 = vld [vmem:[%s301 + $0xc8] sm:$0xff]
        %v385 = vld [vmem:[%s301 + $0xd0] sm:$0xff]
        %v386 = vld [vmem:[%s301 + $0xd8] sm:$0xff]
        %v387 = vld [vmem:[%s301 + $0xe0] sm:$0xff]
        %v388 = vld [vmem:[%s301 + $0xe8] sm:$0xff]
        %v389 = vld [vmem:[%s301 + $0xf0] sm:$0xff]
        %v390 = vld [vmem:[%s301 + $0xf8] sm:$0xff]
        %v391 = vld [vmem:[%s311] sm:$0xff]
        %v392 = vld [vmem:[%s311 + $0x8] sm:$0xff]
        %v393 = vld [vmem:[#allocation8] sm:$0xff]
        %v394 = vld [vmem:[#allocation8 + $0x8] sm:$0xff]
        %v395 = vld [vmem:[#allocation8 + $0x10] sm:$0xff]
        %v396 = vld [vmem:[#allocation8 + $0x18] sm:$0xff]
        %v397 = vld [vmem:[#allocation8 + $0x20] sm:$0xff]
        %v398 = vld [vmem:[#allocation8 + $0x28] sm:$0xff]
        %v399 = vld [vmem:[#allocation8 + $0x30] sm:$0xff]
        %v400 = vld [vmem:[#allocation8 + $0x38] sm:$0xff]
        %v401 = vld [vmem:[#allocation8 + $0x40] sm:$0xff]
        %v402 = vld [vmem:[#allocation8 + $0x48] sm:$0xff]
        %v403 = vld [vmem:[#allocation8 + $0x50] sm:$0xff]
        %v404 = vld [vmem:[#allocation8 + $0x58] sm:$0xff]
        %v405 = vld [vmem:[#allocation8 + $0x60] sm:$0xff]
        %v406 = vld [vmem:[#allocation8 + $0x68] sm:$0xff]
        %v407 = vld [vmem:[#allocation8 + $0x70] sm:$0xff]
        %v408 = vld [vmem:[#allocation8 + $0x78] sm:$0xff]
        %v409 = vld [vmem:[#allocation10] sm:$0xff]
        %v410 = vld [vmem:[#allocation10 + $0x8] sm:$0xff]
        %v411 = vld [vmem:[#allocation10 + $0x10] sm:$0xff]
        %v412 = vld [vmem:[#allocation10 + $0x18] sm:$0xff]
        %v413 = vld [vmem:[#allocation10 + $0x20] sm:$0xff]
        %v414 = vld [vmem:[#allocation10 + $0x28] sm:$0xff]
        %v415 = vld [vmem:[#allocation10 + $0x30] sm:$0xff]
        %v416 = vld [vmem:[#allocation10 + $0x38] sm:$0xff]
        %v417 = vld [vmem:[#allocation10 + $0x40] sm:$0xff]
        %v418 = vld [vmem:[#allocation10 + $0x48] sm:$0xff]
        %v419 = vld [vmem:[#allocation10 + $0x50] sm:$0xff]
        %v420 = vld [vmem:[#allocation10 + $0x58] sm:$0xff]
        %v421 = vld [vmem:[#allocation10 + $0x60] sm:$0xff]
        %v422 = vld [vmem:[#allocation10 + $0x68] sm:$0xff]
        %v423 = vld [vmem:[#allocation10 + $0x70] sm:$0xff]
        %v424 = vld [vmem:[#allocation10 + $0x78] sm:$0xff]
        %vm425 = vcmp.gt.f32.partialorder %v391, 0.0
        %vm426 = vcmp.gt.f32.partialorder %v392, 0.0
        %v427 = vsel %vm425, 0.0, -inf
        %v428 = vsel %vm426, 0.0, -inf
        %v429 = vperm.slane %v427, 0
        %v430 = vlaneseq
        %v431 = vshrl.u32 %v430, 7
        %433 = vset.pattern.permute.xlu0 %v431
        %434 = vperm.xlu0 %433, %v429
        %v435 = vpop.permute.xlu0 %434
        %v436 = vlaneseq
        %v437 = vshrl.u32 %v436, 7
        %v438 = vadd.s32 %v437, 8
        %439 = vset.pattern.permute.xlu0 %v438
        %440 = vperm.xlu0 %439, %v429
        %v441 = vpop.permute.xlu0 %440
        %v442 = vperm.slane %v427, 1
        %v443 = vlaneseq
        %v444 = vshrl.u32 %v443, 7
        %446 = vset.pattern.permute.xlu0 %v444
        %447 = vperm.xlu0 %446, %v442
        %v448 = vpop.permute.xlu0 %447
        %v449 = vlaneseq
        %v450 = vshrl.u32 %v449, 7
        %v451 = vadd.s32 %v450, 8
        %452 = vset.pattern.permute.xlu0 %v451
        %453 = vperm.xlu0 %452, %v442
        %v454 = vpop.permute.xlu0 %453
        %v455 = vperm.slane %v427, 2
        %v456 = vlaneseq
        %v457 = vshrl.u32 %v456, 7
        %459 = vset.pattern.permute.xlu0 %v457
        %460 = vperm.xlu0 %459, %v455
        %v461 = vpop.permute.xlu0 %460
        %v462 = vlaneseq
        %v463 = vshrl.u32 %v462, 7
        %v464 = vadd.s32 %v463, 8
        %465 = vset.pattern.permute.xlu0 %v464
        %466 = vperm.xlu0 %465, %v455
        %v467 = vpop.permute.xlu0 %466
        %v468 = vperm.slane %v427, 3
        %v469 = vlaneseq
        %v470 = vshrl.u32 %v469, 7
        %472 = vset.pattern.permute.xlu0 %v470
        %473 = vperm.xlu0 %472, %v468
        %v474 = vpop.permute.xlu0 %473
        %v475 = vlaneseq
        %v476 = vshrl.u32 %v475, 7
        %v477 = vadd.s32 %v476, 8
        %478 = vset.pattern.permute.xlu0 %v477
        %479 = vperm.xlu0 %478, %v468
        %v480 = vpop.permute.xlu0 %479
        %v481 = vperm.slane %v427, 4
        %v482 = vlaneseq
        %v483 = vshrl.u32 %v482, 7
        %485 = vset.pattern.permute.xlu0 %v483
        %486 = vperm.xlu0 %485, %v481
        %v487 = vpop.permute.xlu0 %486
        %v488 = vlaneseq
        %v489 = vshrl.u32 %v488, 7
        %v490 = vadd.s32 %v489, 8
        %491 = vset.pattern.permute.xlu0 %v490
        %492 = vperm.xlu0 %491, %v481
        %v493 = vpop.permute.xlu0 %492
        %v494 = vperm.slane %v427, 5
        %v495 = vlaneseq
        %v496 = vshrl.u32 %v495, 7
        %498 = vset.pattern.permute.xlu0 %v496
        %499 = vperm.xlu0 %498, %v494
        %v500 = vpop.permute.xlu0 %499
        %v501 = vlaneseq
        %v502 = vshrl.u32 %v501, 7
        %v503 = vadd.s32 %v502, 8
        %504 = vset.pattern.permute.xlu0 %v503
        %505 = vperm.xlu0 %504, %v494
        %v506 = vpop.permute.xlu0 %505
        %v507 = vperm.slane %v427, 6
        %v508 = vlaneseq
        %v509 = vshrl.u32 %v508, 7
        %511 = vset.pattern.permute.xlu0 %v509
        %512 = vperm.xlu0 %511, %v507
        %v513 = vpop.permute.xlu0 %512
        %v514 = vlaneseq
        %v515 = vshrl.u32 %v514, 7
        %v516 = vadd.s32 %v515, 8
        %517 = vset.pattern.permute.xlu0 %v516
        %518 = vperm.xlu0 %517, %v507
        %v519 = vpop.permute.xlu0 %518
        %v520 = vperm.slane %v427, 7
        %v521 = vlaneseq
        %v522 = vshrl.u32 %v521, 7
        %524 = vset.pattern.permute.xlu0 %v522
        %525 = vperm.xlu0 %524, %v520
        %v526 = vpop.permute.xlu0 %525
        %v527 = vlaneseq
        %v528 = vshrl.u32 %v527, 7
        %v529 = vadd.s32 %v528, 8
        %530 = vset.pattern.permute.xlu0 %v529
        %531 = vperm.xlu0 %530, %v520
        %v532 = vpop.permute.xlu0 %531
        %v533 = vperm.slane %v428, 0
        %v534 = vlaneseq
        %v535 = vshrl.u32 %v534, 7
        %537 = vset.pattern.permute.xlu0 %v535
        %538 = vperm.xlu0 %537, %v533
        %v539 = vpop.permute.xlu0 %538
        %v540 = vlaneseq
        %v541 = vshrl.u32 %v540, 7
        %v542 = vadd.s32 %v541, 8
        %543 = vset.pattern.permute.xlu0 %v542
        %544 = vperm.xlu0 %543, %v533
        %v545 = vpop.permute.xlu0 %544
        %v546 = vperm.slane %v428, 1
        %v547 = vlaneseq
        %v548 = vshrl.u32 %v547, 7
        %550 = vset.pattern.permute.xlu0 %v548
        %551 = vperm.xlu0 %550, %v546
        %v552 = vpop.permute.xlu0 %551
        %v553 = vlaneseq
        %v554 = vshrl.u32 %v553, 7
        %v555 = vadd.s32 %v554, 8
        %556 = vset.pattern.permute.xlu0 %v555
        %557 = vperm.xlu0 %556, %v546
        %v558 = vpop.permute.xlu0 %557
        %v559 = vperm.slane %v428, 2
        %v560 = vlaneseq
        %v561 = vshrl.u32 %v560, 7
        %563 = vset.pattern.permute.xlu0 %v561
        %564 = vperm.xlu0 %563, %v559
        %v565 = vpop.permute.xlu0 %564
        %v566 = vlaneseq
        %v567 = vshrl.u32 %v566, 7
        %v568 = vadd.s32 %v567, 8
        %569 = vset.pattern.permute.xlu0 %v568
        %570 = vperm.xlu0 %569, %v559
        %v571 = vpop.permute.xlu0 %570
        %v572 = vperm.slane %v428, 3
        %v573 = vlaneseq
        %v574 = vshrl.u32 %v573, 7
        %576 = vset.pattern.permute.xlu0 %v574
        %577 = vperm.xlu0 %576, %v572
        %v578 = vpop.permute.xlu0 %577
        %v579 = vlaneseq
        %v580 = vshrl.u32 %v579, 7
        %v581 = vadd.s32 %v580, 8
        %582 = vset.pattern.permute.xlu0 %v581
        %583 = vperm.xlu0 %582, %v572
        %v584 = vpop.permute.xlu0 %583
        %v585 = vperm.slane %v428, 4
        %v586 = vlaneseq
        %v587 = vshrl.u32 %v586, 7
        %589 = vset.pattern.permute.xlu0 %v587
        %590 = vperm.xlu0 %589, %v585
        %v591 = vpop.permute.xlu0 %590
        %v592 = vlaneseq
        %v593 = vshrl.u32 %v592, 7
        %v594 = vadd.s32 %v593, 8
        %595 = vset.pattern.permute.xlu0 %v594
        %596 = vperm.xlu0 %595, %v585
        %v597 = vpop.permute.xlu0 %596
        %v598 = vperm.slane %v428, 5
        %v599 = vlaneseq
        %v600 = vshrl.u32 %v599, 7
        %602 = vset.pattern.permute.xlu0 %v600
        %603 = vperm.xlu0 %602, %v598
        %v604 = vpop.permute.xlu0 %603
        %v605 = vlaneseq
        %v606 = vshrl.u32 %v605, 7
        %v607 = vadd.s32 %v606, 8
        %608 = vset.pattern.permute.xlu0 %v607
        %609 = vperm.xlu0 %608, %v598
        %v610 = vpop.permute.xlu0 %609
        %v611 = vperm.slane %v428, 6
        %v612 = vlaneseq
        %v613 = vshrl.u32 %v612, 7
        %615 = vset.pattern.permute.xlu0 %v613
        %616 = vperm.xlu0 %615, %v611
        %v617 = vpop.permute.xlu0 %616
        %v618 = vlaneseq
        %v619 = vshrl.u32 %v618, 7
        %v620 = vadd.s32 %v619, 8
        %621 = vset.pattern.permute.xlu0 %v620
        %622 = vperm.xlu0 %621, %v611
        %v623 = vpop.permute.xlu0 %622
        %v624 = vperm.slane %v428, 7
        %v625 = vlaneseq
        %v626 = vshrl.u32 %v625, 7
        %628 = vset.pattern.permute.xlu0 %v626
        %629 = vperm.xlu0 %628, %v624
        %v630 = vpop.permute.xlu0 %629
        %v631 = vlaneseq
        %v632 = vshrl.u32 %v631, 7
        %v633 = vadd.s32 %v632, 8
        %634 = vset.pattern.permute.xlu0 %v633
        %635 = vperm.xlu0 %634, %v624
        %v636 = vpop.permute.xlu0 %635
        %v637 = vadd.f32 %v359, %v435
        %v638 = vadd.f32 %v360, %v441
        %v639 = vadd.f32 %v361, %v448
        %v640 = vadd.f32 %v362, %v454
        %v641 = vadd.f32 %v363, %v461
        %v642 = vadd.f32 %v364, %v467
        %v643 = vadd.f32 %v365, %v474
        %v644 = vadd.f32 %v366, %v480
        %v645 = vadd.f32 %v367, %v487
        %v646 = vadd.f32 %v368, %v493
        %v647 = vadd.f32 %v369, %v500
        %v648 = vadd.f32 %v370, %v506
        %v649 = vadd.f32 %v371, %v513
        %v650 = vadd.f32 %v372, %v519
        %v651 = vadd.f32 %v373, %v526
        %v652 = vadd.f32 %v374, %v532
        %v653 = vadd.f32 %v375, %v539
        %v654 = vadd.f32 %v376, %v545
        %v655 = vadd.f32 %v377, %v552
        %v656 = vadd.f32 %v378, %v558
        %v657 = vadd.f32 %v379, %v565
        %v658 = vadd.f32 %v380, %v571
        %v659 = vadd.f32 %v381, %v578
        %v660 = vadd.f32 %v382, %v584
        %v661 = vadd.f32 %v383, %v591
        %v662 = vadd.f32 %v384, %v597
        %v663 = vadd.f32 %v385, %v604
        %v664 = vadd.f32 %v386, %v610
        %v665 = vadd.f32 %v387, %v617
        %v666 = vadd.f32 %v388, %v623
        %v667 = vadd.f32 %v389, %v630
        %v668 = vadd.f32 %v390, %v636
        %v669 = vmax.f32 %v637, %v638
        %v670 = vrot.slane %v669, 4
        %v671 = vmax.f32 %v669, %v670
        %v672 = vrot.slane %v671, 2
        %v673 = vmax.f32 %v671, %v672
        %v674 = vrot.slane %v673, 1
        %v675 = vmax.f32 %v673, %v674
        %v676 = vmax.f32 %v639, %v640
        %v677 = vrot.slane %v676, 4
        %v678 = vmax.f32 %v676, %v677
        %v679 = vrot.slane %v678, 2
        %v680 = vmax.f32 %v678, %v679
        %v681 = vrot.slane %v680, 1
        %v682 = vmax.f32 %v680, %v681
        %v683 = vmax.f32 %v641, %v642
        %v684 = vrot.slane %v683, 4
        %v685 = vmax.f32 %v683, %v684
        %v686 = vrot.slane %v685, 2
        %v687 = vmax.f32 %v685, %v686
        %v688 = vrot.slane %v687, 1
        %v689 = vmax.f32 %v687, %v688
        %v690 = vmax.f32 %v643, %v644
        %v691 = vrot.slane %v690, 4
        %v692 = vmax.f32 %v690, %v691
        %v693 = vrot.slane %v692, 2
        %v694 = vmax.f32 %v692, %v693
        %v695 = vrot.slane %v694, 1
        %v696 = vmax.f32 %v694, %v695
        %v697 = vmax.f32 %v645, %v646
        %v698 = vrot.slane %v697, 4
        %v699 = vmax.f32 %v697, %v698
        %v700 = vrot.slane %v699, 2
        %v701 = vmax.f32 %v699, %v700
        %v702 = vrot.slane %v701, 1
        %v703 = vmax.f32 %v701, %v702
        %v704 = vmax.f32 %v647, %v648
        %v705 = vrot.slane %v704, 4
        %v706 = vmax.f32 %v704, %v705
        %v707 = vrot.slane %v706, 2
        %v708 = vmax.f32 %v706, %v707
        %v709 = vrot.slane %v708, 1
        %v710 = vmax.f32 %v708, %v709
        %v711 = vmax.f32 %v649, %v650
        %v712 = vrot.slane %v711, 4
        %v713 = vmax.f32 %v711, %v712
        %v714 = vrot.slane %v713, 2
        %v715 = vmax.f32 %v713, %v714
        %v716 = vrot.slane %v715, 1
        %v717 = vmax.f32 %v715, %v716
        %v718 = vmax.f32 %v651, %v652
        %v719 = vrot.slane %v718, 4
        %v720 = vmax.f32 %v718, %v719
        %v721 = vrot.slane %v720, 2
        %v722 = vmax.f32 %v720, %v721
        %v723 = vrot.slane %v722, 1
        %v724 = vmax.f32 %v722, %v723
        %v725 = vmax.f32 %v653, %v654
        %v726 = vrot.slane %v725, 4
        %v727 = vmax.f32 %v725, %v726
        %v728 = vrot.slane %v727, 2
        %v729 = vmax.f32 %v727, %v728
        %v730 = vrot.slane %v729, 1
        %v731 = vmax.f32 %v729, %v730
        %v732 = vmax.f32 %v655, %v656
        %v733 = vrot.slane %v732, 4
        %v734 = vmax.f32 %v732, %v733
        %v735 = vrot.slane %v734, 2
        %v736 = vmax.f32 %v734, %v735
        %v737 = vrot.slane %v736, 1
        %v738 = vmax.f32 %v736, %v737
        %v739 = vmax.f32 %v657, %v658
        %v740 = vrot.slane %v739, 4
        %v741 = vmax.f32 %v739, %v740
        %v742 = vrot.slane %v741, 2
        %v743 = vmax.f32 %v741, %v742
        %v744 = vrot.slane %v743, 1
        %v745 = vmax.f32 %v743, %v744
        %v746 = vmax.f32 %v659, %v660
        %v747 = vrot.slane %v746, 4
        %v748 = vmax.f32 %v746, %v747
        %v749 = vrot.slane %v748, 2
        %v750 = vmax.f32 %v748, %v749
        %v751 = vrot.slane %v750, 1
        %v752 = vmax.f32 %v750, %v751
        %v753 = vmax.f32 %v661, %v662
        %v754 = vrot.slane %v753, 4
        %v755 = vmax.f32 %v753, %v754
        %v756 = vrot.slane %v755, 2
        %v757 = vmax.f32 %v755, %v756
        %v758 = vrot.slane %v757, 1
        %v759 = vmax.f32 %v757, %v758
        %v760 = vmax.f32 %v663, %v664
        %v761 = vrot.slane %v760, 4
        %v762 = vmax.f32 %v760, %v761
        %v763 = vrot.slane %v762, 2
        %v764 = vmax.f32 %v762, %v763
        %v765 = vrot.slane %v764, 1
        %v766 = vmax.f32 %v764, %v765
        %v767 = vmax.f32 %v665, %v666
        %v768 = vrot.slane %v767, 4
        %v769 = vmax.f32 %v767, %v768
        %v770 = vrot.slane %v769, 2
        %v771 = vmax.f32 %v769, %v770
        %v772 = vrot.slane %v771, 1
        %v773 = vmax.f32 %v771, %v772
        %v774 = vmax.f32 %v667, %v668
        %v775 = vrot.slane %v774, 4
        %v776 = vmax.f32 %v774, %v775
        %v777 = vrot.slane %v776, 2
        %v778 = vmax.f32 %v776, %v777
        %v779 = vrot.slane %v778, 1
        %v780 = vmax.f32 %v778, %v779
        %v781 = vsub.f32 %v637, %v675
        %v782 = vsub.f32 %v638, %v675
        %v783 = vsub.f32 %v639, %v682
        %v784 = vsub.f32 %v640, %v682
        %v785 = vsub.f32 %v641, %v689
        %v786 = vsub.f32 %v642, %v689
        %v787 = vsub.f32 %v643, %v696
        %v788 = vsub.f32 %v644, %v696
        %v789 = vsub.f32 %v645, %v703
        %v790 = vsub.f32 %v646, %v703
        %v791 = vsub.f32 %v647, %v710
        %v792 = vsub.f32 %v648, %v710
        %v793 = vsub.f32 %v649, %v717
        %v794 = vsub.f32 %v650, %v717
        %v795 = vsub.f32 %v651, %v724
        %v796 = vsub.f32 %v652, %v724
        %v797 = vsub.f32 %v653, %v731
        %v798 = vsub.f32 %v654, %v731
        %v799 = vsub.f32 %v655, %v738
        %v800 = vsub.f32 %v656, %v738
        %v801 = vsub.f32 %v657, %v745
        %v802 = vsub.f32 %v658, %v745
        %v803 = vsub.f32 %v659, %v752
        %v804 = vsub.f32 %v660, %v752
        %v805 = vsub.f32 %v661, %v759
        %v806 = vsub.f32 %v662, %v759
        %v807 = vsub.f32 %v663, %v766
        %v808 = vsub.f32 %v664, %v766
        %v809 = vsub.f32 %v665, %v773
        %v810 = vsub.f32 %v666, %v773
        %v811 = vsub.f32 %v667, %v780
        %v812 = vsub.f32 %v668, %v780
        %v813 = vmul.f32 %v781, 1.442695
        %v814 = vpow.pop %v813
        %v815 = vmul.f32 %v782, 1.442695
        %v816 = vpow.pop %v815
        %v817 = vmul.f32 %v783, 1.442695
        %v818 = vpow.pop %v817
        %v819 = vmul.f32 %v784, 1.442695
        %v820 = vpow.pop %v819
        %v821 = vmul.f32 %v785, 1.442695
        %v822 = vpow.pop %v821
        %v823 = vmul.f32 %v786, 1.442695
        %v824 = vpow.pop %v823
        %v825 = vmul.f32 %v787, 1.442695
        %v826 = vpow.pop %v825
        %v827 = vmul.f32 %v788, 1.442695
        %v828 = vpow.pop %v827
        %v829 = vmul.f32 %v789, 1.442695
        %v830 = vpow.pop %v829
        %v831 = vmul.f32 %v790, 1.442695
        %v832 = vpow.pop %v831
        %v833 = vmul.f32 %v791, 1.442695
        %v834 = vpow.pop %v833
        %v835 = vmul.f32 %v792, 1.442695
        %v836 = vpow.pop %v835
        %v837 = vmul.f32 %v793, 1.442695
        %v838 = vpow.pop %v837
        %v839 = vmul.f32 %v794, 1.442695
        %v840 = vpow.pop %v839
        %v841 = vmul.f32 %v795, 1.442695
        %v842 = vpow.pop %v841
        %v843 = vmul.f32 %v796, 1.442695
        %v844 = vpow.pop %v843
        %v845 = vmul.f32 %v797, 1.442695
        %v846 = vpow.pop %v845
        %v847 = vmul.f32 %v798, 1.442695
        %v848 = vpow.pop %v847
        %v849 = vmul.f32 %v799, 1.442695
        %v850 = vpow.pop %v849
        %v851 = vmul.f32 %v800, 1.442695
        %v852 = vpow.pop %v851
        %v853 = vmul.f32 %v801, 1.442695
        %v854 = vpow.pop %v853
        %v855 = vmul.f32 %v802, 1.442695
        %v856 = vpow.pop %v855
        %v857 = vmul.f32 %v803, 1.442695
        %v858 = vpow.pop %v857
        %v859 = vmul.f32 %v804, 1.442695
        %v860 = vpow.pop %v859
        %v861 = vmul.f32 %v805, 1.442695
        %v862 = vpow.pop %v861
        %v863 = vmul.f32 %v806, 1.442695
        %v864 = vpow.pop %v863
        %v865 = vmul.f32 %v807, 1.442695
        %v866 = vpow.pop %v865
        %v867 = vmul.f32 %v808, 1.442695
        %v868 = vpow.pop %v867
        %v869 = vmul.f32 %v809, 1.442695
        %v870 = vpow.pop %v869
        %v871 = vmul.f32 %v810, 1.442695
        %v872 = vpow.pop %v871
        %v873 = vmul.f32 %v811, 1.442695
        %v874 = vpow.pop %v873
        %v875 = vmul.f32 %v812, 1.442695
        %v876 = vpow.pop %v875
        %v877 = vadd.f32 %v814, %v816
        %v878 = vrot.slane %v877, 4
        %v879 = vadd.f32 %v877, %v878
        %v880 = vrot.slane %v879, 2
        %v881 = vadd.f32 %v879, %v880
        %v882 = vrot.slane %v881, 1
        %v883 = vadd.f32 %v881, %v882
        %v884 = vadd.f32 %v818, %v820
        %v885 = vrot.slane %v884, 4
        %v886 = vadd.f32 %v884, %v885
        %v887 = vrot.slane %v886, 2
        %v888 = vadd.f32 %v886, %v887
        %v889 = vrot.slane %v888, 1
        %v890 = vadd.f32 %v888, %v889
        %v891 = vadd.f32 %v822, %v824
        %v892 = vrot.slane %v891, 4
        %v893 = vadd.f32 %v891, %v892
        %v894 = vrot.slane %v893, 2
        %v895 = vadd.f32 %v893, %v894
        %v896 = vrot.slane %v895, 1
        %v897 = vadd.f32 %v895, %v896
        %v898 = vadd.f32 %v826, %v828
        %v899 = vrot.slane %v898, 4
        %v900 = vadd.f32 %v898, %v899
        %v901 = vrot.slane %v900, 2
        %v902 = vadd.f32 %v900, %v901
        %v903 = vrot.slane %v902, 1
        %v904 = vadd.f32 %v902, %v903
        %v905 = vadd.f32 %v830, %v832
        %v906 = vrot.slane %v905, 4
        %v907 = vadd.f32 %v905, %v906
        %v908 = vrot.slane %v907, 2
        %v909 = vadd.f32 %v907, %v908
        %v910 = vrot.slane %v909, 1
        %v911 = vadd.f32 %v909, %v910
        %v912 = vadd.f32 %v834, %v836
        %v913 = vrot.slane %v912, 4
        %v914 = vadd.f32 %v912, %v913
        %v915 = vrot.slane %v914, 2
        %v916 = vadd.f32 %v914, %v915
        %v917 = vrot.slane %v916, 1
        %v918 = vadd.f32 %v916, %v917
        %v919 = vadd.f32 %v838, %v840
        %v920 = vrot.slane %v919, 4
        %v921 = vadd.f32 %v919, %v920
        %v922 = vrot.slane %v921, 2
        %v923 = vadd.f32 %v921, %v922
        %v924 = vrot.slane %v923, 1
        %v925 = vadd.f32 %v923, %v924
        %v926 = vadd.f32 %v842, %v844
        %v927 = vrot.slane %v926, 4
        %v928 = vadd.f32 %v926, %v927
        %v929 = vrot.slane %v928, 2
        %v930 = vadd.f32 %v928, %v929
        %v931 = vrot.slane %v930, 1
        %v932 = vadd.f32 %v930, %v931
        %v933 = vadd.f32 %v846, %v848
        %v934 = vrot.slane %v933, 4
        %v935 = vadd.f32 %v933, %v934
        %v936 = vrot.slane %v935, 2
        %v937 = vadd.f32 %v935, %v936
        %v938 = vrot.slane %v937, 1
        %v939 = vadd.f32 %v937, %v938
        %v940 = vadd.f32 %v850, %v852
        %v941 = vrot.slane %v940, 4
        %v942 = vadd.f32 %v940, %v941
        %v943 = vrot.slane %v942, 2
        %v944 = vadd.f32 %v942, %v943
        %v945 = vrot.slane %v944, 1
        %v946 = vadd.f32 %v944, %v945
        %v947 = vadd.f32 %v854, %v856
        %v948 = vrot.slane %v947, 4
        %v949 = vadd.f32 %v947, %v948
        %v950 = vrot.slane %v949, 2
        %v951 = vadd.f32 %v949, %v950
        %v952 = vrot.slane %v951, 1
        %v953 = vadd.f32 %v951, %v952
        %v954 = vadd.f32 %v858, %v860
        %v955 = vrot.slane %v954, 4
        %v956 = vadd.f32 %v954, %v955
        %v957 = vrot.slane %v956, 2
        %v958 = vadd.f32 %v956, %v957
        %v959 = vrot.slane %v958, 1
        %v960 = vadd.f32 %v958, %v959
        %v961 = vadd.f32 %v862, %v864
        %v962 = vrot.slane %v961, 4
        %v963 = vadd.f32 %v961, %v962
        %v964 = vrot.slane %v963, 2
        %v965 = vadd.f32 %v963, %v964
        %v966 = vrot.slane %v965, 1
        %v967 = vadd.f32 %v965, %v966
        %v968 = vadd.f32 %v866, %v868
        %v969 = vrot.slane %v968, 4
        %v970 = vadd.f32 %v968, %v969
        %v971 = vrot.slane %v970, 2
        %v972 = vadd.f32 %v970, %v971
        %v973 = vrot.slane %v972, 1
        %v974 = vadd.f32 %v972, %v973
        %v975 = vadd.f32 %v870, %v872
        %v976 = vrot.slane %v975, 4
        %v977 = vadd.f32 %v975, %v976
        %v978 = vrot.slane %v977, 2
        %v979 = vadd.f32 %v977, %v978
        %v980 = vrot.slane %v979, 1
        %v981 = vadd.f32 %v979, %v980
        %v982 = vadd.f32 %v874, %v876
        %v983 = vrot.slane %v982, 4
        %v984 = vadd.f32 %v982, %v983
        %v985 = vrot.slane %v984, 2
        %v986 = vadd.f32 %v984, %v985
        %v987 = vrot.slane %v986, 1
        %v988 = vadd.f32 %v986, %v987
        %v989 = vrcp.pop %v883
        %v990 = vmul.f32 %v883, %v989
        %v991 = vsub.f32 1.0, %v990
        %v992 = vmul.f32 %v989, %v991
        %v993 = vadd.f32 %v989, %v992
        %vm994 = vweird.f32 %v883
        %vm995 = vweird.f32 %v989
        %vm996 = vmor %vm994, %vm995
        %v997 = vsel %vm996, %v989, %v993
        %v998 = vand.u32 2147483647, %v883
        %vm999 = vcmp.eq.f32.partialorder %v998, 8.507059e+37
        %v1000 = vand.u32 %v883, 2147483648
        %v1001 = vor.u32 1.1754944e-38, %v1000
        %v1002 = vsel %vm999, %v1001, %v997
        %v1003 = vrcp.pop %v890
        %v1004 = vmul.f32 %v890, %v1003
        %v1005 = vsub.f32 1.0, %v1004
        %v1006 = vmul.f32 %v1003, %v1005
        %v1007 = vadd.f32 %v1003, %v1006
        %vm1008 = vweird.f32 %v890
        %vm1009 = vweird.f32 %v1003
        %vm1010 = vmor %vm1008, %vm1009
        %v1011 = vsel %vm1010, %v1003, %v1007
        %v1012 = vand.u32 2147483647, %v890
        %vm1013 = vcmp.eq.f32.partialorder %v1012, 8.507059e+37
        %v1014 = vand.u32 %v890, 2147483648
        %v1015 = vor.u32 1.1754944e-38, %v1014
        %v1016 = vsel %vm1013, %v1015, %v1011
        %v1017 = vrcp.pop %v897
        %v1018 = vmul.f32 %v897, %v1017
        %v1019 = vsub.f32 1.0, %v1018
        %v1020 = vmul.f32 %v1017, %v1019
        %v1021 = vadd.f32 %v1017, %v1020
        %vm1022 = vweird.f32 %v897
        %vm1023 = vweird.f32 %v1017
        %vm1024 = vmor %vm1022, %vm1023
        %v1025 = vsel %vm1024, %v1017, %v1021
        %v1026 = vand.u32 2147483647, %v897
        %vm1027 = vcmp.eq.f32.partialorder %v1026, 8.507059e+37
        %v1028 = vand.u32 %v897, 2147483648
        %v1029 = vor.u32 1.1754944e-38, %v1028
        %v1030 = vsel %vm1027, %v1029, %v1025
        %v1031 = vrcp.pop %v904
        %v1032 = vmul.f32 %v904, %v1031
        %v1033 = vsub.f32 1.0, %v1032
        %v1034 = vmul.f32 %v1031, %v1033
        %v1035 = vadd.f32 %v1031, %v1034
        %vm1036 = vweird.f32 %v904
        %vm1037 = vweird.f32 %v1031
        %vm1038 = vmor %vm1036, %vm1037
        %v1039 = vsel %vm1038, %v1031, %v1035
        %v1040 = vand.u32 2147483647, %v904
        %vm1041 = vcmp.eq.f32.partialorder %v1040, 8.507059e+37
        %v1042 = vand.u32 %v904, 2147483648
        %v1043 = vor.u32 1.1754944e-38, %v1042
        %v1044 = vsel %vm1041, %v1043, %v1039
        %v1045 = vrcp.pop %v911
        %v1046 = vmul.f32 %v911, %v1045
        %v1047 = vsub.f32 1.0, %v1046
        %v1048 = vmul.f32 %v1045, %v1047
        %v1049 = vadd.f32 %v1045, %v1048
        %vm1050 = vweird.f32 %v911
        %vm1051 = vweird.f32 %v1045
        %vm1052 = vmor %vm1050, %vm1051
        %v1053 = vsel %vm1052, %v1045, %v1049
        %v1054 = vand.u32 2147483647, %v911
        %vm1055 = vcmp.eq.f32.partialorder %v1054, 8.507059e+37
        %v1056 = vand.u32 %v911, 2147483648
        %v1057 = vor.u32 1.1754944e-38, %v1056
        %v1058 = vsel %vm1055, %v1057, %v1053
        %v1059 = vrcp.pop %v918
        %v1060 = vmul.f32 %v918, %v1059
        %v1061 = vsub.f32 1.0, %v1060
        %v1062 = vmul.f32 %v1059, %v1061
        %v1063 = vadd.f32 %v1059, %v1062
        %vm1064 = vweird.f32 %v918
        %vm1065 = vweird.f32 %v1059
        %vm1066 = vmor %vm1064, %vm1065
        %v1067 = vsel %vm1066, %v1059, %v1063
        %v1068 = vand.u32 2147483647, %v918
        %vm1069 = vcmp.eq.f32.partialorder %v1068, 8.507059e+37
        %v1070 = vand.u32 %v918, 2147483648
        %v1071 = vor.u32 1.1754944e-38, %v1070
        %v1072 = vsel %vm1069, %v1071, %v1067
        %v1073 = vrcp.pop %v925
        %v1074 = vmul.f32 %v925, %v1073
        %v1075 = vsub.f32 1.0, %v1074
        %v1076 = vmul.f32 %v1073, %v1075
        %v1077 = vadd.f32 %v1073, %v1076
        %vm1078 = vweird.f32 %v925
        %vm1079 = vweird.f32 %v1073
        %vm1080 = vmor %vm1078, %vm1079
        %v1081 = vsel %vm1080, %v1073, %v1077
        %v1082 = vand.u32 2147483647, %v925
        %vm1083 = vcmp.eq.f32.partialorder %v1082, 8.507059e+37
        %v1084 = vand.u32 %v925, 2147483648
        %v1085 = vor.u32 1.1754944e-38, %v1084
        %v1086 = vsel %vm1083, %v1085, %v1081
        %v1087 = vrcp.pop %v932
        %v1088 = vmul.f32 %v932, %v1087
        %v1089 = vsub.f32 1.0, %v1088
        %v1090 = vmul.f32 %v1087, %v1089
        %v1091 = vadd.f32 %v1087, %v1090
        %vm1092 = vweird.f32 %v932
        %vm1093 = vweird.f32 %v1087
        %vm1094 = vmor %vm1092, %vm1093
        %v1095 = vsel %vm1094, %v1087, %v1091
        %v1096 = vand.u32 2147483647, %v932
        %vm1097 = vcmp.eq.f32.partialorder %v1096, 8.507059e+37
        %v1098 = vand.u32 %v932, 2147483648
        %v1099 = vor.u32 1.1754944e-38, %v1098
        %v1100 = vsel %vm1097, %v1099, %v1095
        %v1101 = vrcp.pop %v939
        %v1102 = vmul.f32 %v939, %v1101
        %v1103 = vsub.f32 1.0, %v1102
        %v1104 = vmul.f32 %v1101, %v1103
        %v1105 = vadd.f32 %v1101, %v1104
        %vm1106 = vweird.f32 %v939
        %vm1107 = vweird.f32 %v1101
        %vm1108 = vmor %vm1106, %vm1107
        %v1109 = vsel %vm1108, %v1101, %v1105
        %v1110 = vand.u32 2147483647, %v939
        %vm1111 = vcmp.eq.f32.partialorder %v1110, 8.507059e+37
        %v1112 = vand.u32 %v939, 2147483648
        %v1113 = vor.u32 1.1754944e-38, %v1112
        %v1114 = vsel %vm1111, %v1113, %v1109
        %v1115 = vrcp.pop %v946
        %v1116 = vmul.f32 %v946, %v1115
        %v1117 = vsub.f32 1.0, %v1116
        %v1118 = vmul.f32 %v1115, %v1117
        %v1119 = vadd.f32 %v1115, %v1118
        %vm1120 = vweird.f32 %v946
        %vm1121 = vweird.f32 %v1115
        %vm1122 = vmor %vm1120, %vm1121
        %v1123 = vsel %vm1122, %v1115, %v1119
        %v1124 = vand.u32 2147483647, %v946
        %vm1125 = vcmp.eq.f32.partialorder %v1124, 8.507059e+37
        %v1126 = vand.u32 %v946, 2147483648
        %v1127 = vor.u32 1.1754944e-38, %v1126
        %v1128 = vsel %vm1125, %v1127, %v1123
        %v1129 = vrcp.pop %v953
        %v1130 = vmul.f32 %v953, %v1129
        %v1131 = vsub.f32 1.0, %v1130
        %v1132 = vmul.f32 %v1129, %v1131
        %v1133 = vadd.f32 %v1129, %v1132
        %vm1134 = vweird.f32 %v953
        %vm1135 = vweird.f32 %v1129
        %vm1136 = vmor %vm1134, %vm1135
        %v1137 = vsel %vm1136, %v1129, %v1133
        %v1138 = vand.u32 2147483647, %v953
        %vm1139 = vcmp.eq.f32.partialorder %v1138, 8.507059e+37
        %v1140 = vand.u32 %v953, 2147483648
        %v1141 = vor.u32 1.1754944e-38, %v1140
        %v1142 = vsel %vm1139, %v1141, %v1137
        %v1143 = vrcp.pop %v960
        %v1144 = vmul.f32 %v960, %v1143
        %v1145 = vsub.f32 1.0, %v1144
        %v1146 = vmul.f32 %v1143, %v1145
        %v1147 = vadd.f32 %v1143, %v1146
        %vm1148 = vweird.f32 %v960
        %vm1149 = vweird.f32 %v1143
        %vm1150 = vmor %vm1148, %vm1149
        %v1151 = vsel %vm1150, %v1143, %v1147
        %v1152 = vand.u32 2147483647, %v960
        %vm1153 = vcmp.eq.f32.partialorder %v1152, 8.507059e+37
        %v1154 = vand.u32 %v960, 2147483648
        %v1155 = vor.u32 1.1754944e-38, %v1154
        %v1156 = vsel %vm1153, %v1155, %v1151
        %v1157 = vrcp.pop %v967
        %v1158 = vmul.f32 %v967, %v1157
        %v1159 = vsub.f32 1.0, %v1158
        %v1160 = vmul.f32 %v1157, %v1159
        %v1161 = vadd.f32 %v1157, %v1160
        %vm1162 = vweird.f32 %v967
        %vm1163 = vweird.f32 %v1157
        %vm1164 = vmor %vm1162, %vm1163
        %v1165 = vsel %vm1164, %v1157, %v1161
        %v1166 = vand.u32 2147483647, %v967
        %vm1167 = vcmp.eq.f32.partialorder %v1166, 8.507059e+37
        %v1168 = vand.u32 %v967, 2147483648
        %v1169 = vor.u32 1.1754944e-38, %v1168
        %v1170 = vsel %vm1167, %v1169, %v1165
        %v1171 = vrcp.pop %v974
        %v1172 = vmul.f32 %v974, %v1171
        %v1173 = vsub.f32 1.0, %v1172
        %v1174 = vmul.f32 %v1171, %v1173
        %v1175 = vadd.f32 %v1171, %v1174
        %vm1176 = vweird.f32 %v974
        %vm1177 = vweird.f32 %v1171
        %vm1178 = vmor %vm1176, %vm1177
        %v1179 = vsel %vm1178, %v1171, %v1175
        %v1180 = vand.u32 2147483647, %v974
        %vm1181 = vcmp.eq.f32.partialorder %v1180, 8.507059e+37
        %v1182 = vand.u32 %v974, 2147483648
        %v1183 = vor.u32 1.1754944e-38, %v1182
        %v1184 = vsel %vm1181, %v1183, %v1179
        %v1185 = vrcp.pop %v981
        %v1186 = vmul.f32 %v981, %v1185
        %v1187 = vsub.f32 1.0, %v1186
        %v1188 = vmul.f32 %v1185, %v1187
        %v1189 = vadd.f32 %v1185, %v1188
        %vm1190 = vweird.f32 %v981
        %vm1191 = vweird.f32 %v1185
        %vm1192 = vmor %vm1190, %vm1191
        %v1193 = vsel %vm1192, %v1185, %v1189
        %v1194 = vand.u32 2147483647, %v981
        %vm1195 = vcmp.eq.f32.partialorder %v1194, 8.507059e+37
        %v1196 = vand.u32 %v981, 2147483648
        %v1197 = vor.u32 1.1754944e-38, %v1196
        %v1198 = vsel %vm1195, %v1197, %v1193
        %v1199 = vrcp.pop %v988
        %v1200 = vmul.f32 %v988, %v1199
        %v1201 = vsub.f32 1.0, %v1200
        %v1202 = vmul.f32 %v1199, %v1201
        %v1203 = vadd.f32 %v1199, %v1202
        %vm1204 = vweird.f32 %v988
        %vm1205 = vweird.f32 %v1199
        %vm1206 = vmor %vm1204, %vm1205
        %v1207 = vsel %vm1206, %v1199, %v1203
        %v1208 = vand.u32 2147483647, %v988
        %vm1209 = vcmp.eq.f32.partialorder %v1208, 8.507059e+37
        %v1210 = vand.u32 %v988, 2147483648
        %v1211 = vor.u32 1.1754944e-38, %v1210
        %v1212 = vsel %vm1209, %v1211, %v1207
        %v1213 = vmul.f32 %v814, %v1002
        %v1214 = vmul.f32 %v816, %v1002
        %v1215 = vmul.f32 %v818, %v1016
        %v1216 = vmul.f32 %v820, %v1016
        %v1217 = vmul.f32 %v822, %v1030
        %v1218 = vmul.f32 %v824, %v1030
        %v1219 = vmul.f32 %v826, %v1044
        %v1220 = vmul.f32 %v828, %v1044
        %v1221 = vmul.f32 %v830, %v1058
        %v1222 = vmul.f32 %v832, %v1058
        %v1223 = vmul.f32 %v834, %v1072
        %v1224 = vmul.f32 %v836, %v1072
        %v1225 = vmul.f32 %v838, %v1086
        %v1226 = vmul.f32 %v840, %v1086
        %v1227 = vmul.f32 %v842, %v1100
        %v1228 = vmul.f32 %v844, %v1100
        %v1229 = vmul.f32 %v846, %v1114
        %v1230 = vmul.f32 %v848, %v1114
        %v1231 = vmul.f32 %v850, %v1128
        %v1232 = vmul.f32 %v852, %v1128
        %v1233 = vmul.f32 %v854, %v1142
        %v1234 = vmul.f32 %v856, %v1142
        %v1235 = vmul.f32 %v858, %v1156
        %v1236 = vmul.f32 %v860, %v1156
        %v1237 = vmul.f32 %v862, %v1170
        %v1238 = vmul.f32 %v864, %v1170
        %v1239 = vmul.f32 %v866, %v1184
        %v1240 = vmul.f32 %v868, %v1184
        %v1241 = vmul.f32 %v870, %v1198
        %v1242 = vmul.f32 %v872, %v1198
        %v1243 = vmul.f32 %v874, %v1212
        %v1244 = vmul.f32 %v876, %v1212
        %v1245 = vmul.f32 %v1213, %v1213
        %v1246 = vmul.f32 %v1214, %v1214
        %v1247 = vmul.f32 %v1215, %v1215
        %v1248 = vmul.f32 %v1216, %v1216
        %v1249 = vmul.f32 %v1217, %v1217
        %v1250 = vmul.f32 %v1218, %v1218
        %v1251 = vmul.f32 %v1219, %v1219
        %v1252 = vmul.f32 %v1220, %v1220
        %v1253 = vmul.f32 %v1221, %v1221
        %v1254 = vmul.f32 %v1222, %v1222
        %v1255 = vmul.f32 %v1223, %v1223
        %v1256 = vmul.f32 %v1224, %v1224
        %v1257 = vmul.f32 %v1225, %v1225
        %v1258 = vmul.f32 %v1226, %v1226
        %v1259 = vmul.f32 %v1227, %v1227
        %v1260 = vmul.f32 %v1228, %v1228
        %v1261 = vmul.f32 %v1229, %v1229
        %v1262 = vmul.f32 %v1230, %v1230
        %v1263 = vmul.f32 %v1231, %v1231
        %v1264 = vmul.f32 %v1232, %v1232
        %v1265 = vmul.f32 %v1233, %v1233
        %v1266 = vmul.f32 %v1234, %v1234
        %v1267 = vmul.f32 %v1235, %v1235
        %v1268 = vmul.f32 %v1236, %v1236
        %v1269 = vmul.f32 %v1237, %v1237
        %v1270 = vmul.f32 %v1238, %v1238
        %v1271 = vmul.f32 %v1239, %v1239
        %v1272 = vmul.f32 %v1240, %v1240
        %v1273 = vmul.f32 %v1241, %v1241
        %v1274 = vmul.f32 %v1242, %v1242
        %v1275 = vmul.f32 %v1243, %v1243
        %v1276 = vmul.f32 %v1244, %v1244
        %v1277 = vadd.f32 %v1245, %v1246
        %v1278 = vrot.slane %v1277, 4
        %v1279 = vadd.f32 %v1277, %v1278
        %v1280 = vrot.slane %v1279, 2
        %v1281 = vadd.f32 %v1279, %v1280
        %v1282 = vrot.slane %v1281, 1
        %v1283 = vadd.f32 %v1281, %v1282
        %v1284 = vadd.f32 %v1247, %v1248
        %v1285 = vrot.slane %v1284, 4
        %v1286 = vadd.f32 %v1284, %v1285
        %v1287 = vrot.slane %v1286, 2
        %v1288 = vadd.f32 %v1286, %v1287
        %v1289 = vrot.slane %v1288, 1
        %v1290 = vadd.f32 %v1288, %v1289
        %v1291 = vadd.f32 %v1249, %v1250
        %v1292 = vrot.slane %v1291, 4
        %v1293 = vadd.f32 %v1291, %v1292
        %v1294 = vrot.slane %v1293, 2
        %v1295 = vadd.f32 %v1293, %v1294
        %v1296 = vrot.slane %v1295, 1
        %v1297 = vadd.f32 %v1295, %v1296
        %v1298 = vadd.f32 %v1251, %v1252
        %v1299 = vrot.slane %v1298, 4
        %v1300 = vadd.f32 %v1298, %v1299
        %v1301 = vrot.slane %v1300, 2
        %v1302 = vadd.f32 %v1300, %v1301
        %v1303 = vrot.slane %v1302, 1
        %v1304 = vadd.f32 %v1302, %v1303
        %v1305 = vadd.f32 %v1253, %v1254
        %v1306 = vrot.slane %v1305, 4
        %v1307 = vadd.f32 %v1305, %v1306
        %v1308 = vrot.slane %v1307, 2
        %v1309 = vadd.f32 %v1307, %v1308
        %v1310 = vrot.slane %v1309, 1
        %v1311 = vadd.f32 %v1309, %v1310
        %v1312 = vadd.f32 %v1255, %v1256
        %v1313 = vrot.slane %v1312, 4
        %v1314 = vadd.f32 %v1312, %v1313
        %v1315 = vrot.slane %v1314, 2
        %v1316 = vadd.f32 %v1314, %v1315
        %v1317 = vrot.slane %v1316, 1
        %v1318 = vadd.f32 %v1316, %v1317
        %v1319 = vadd.f32 %v1257, %v1258
        %v1320 = vrot.slane %v1319, 4
        %v1321 = vadd.f32 %v1319, %v1320
        %v1322 = vrot.slane %v1321, 2
        %v1323 = vadd.f32 %v1321, %v1322
        %v1324 = vrot.slane %v1323, 1
        %v1325 = vadd.f32 %v1323, %v1324
        %v1326 = vadd.f32 %v1259, %v1260
        %v1327 = vrot.slane %v1326, 4
        %v1328 = vadd.f32 %v1326, %v1327
        %v1329 = vrot.slane %v1328, 2
        %v1330 = vadd.f32 %v1328, %v1329
        %v1331 = vrot.slane %v1330, 1
        %v1332 = vadd.f32 %v1330, %v1331
        %v1333 = vadd.f32 %v1261, %v1262
        %v1334 = vrot.slane %v1333, 4
        %v1335 = vadd.f32 %v1333, %v1334
        %v1336 = vrot.slane %v1335, 2
        %v1337 = vadd.f32 %v1335, %v1336
        %v1338 = vrot.slane %v1337, 1
        %v1339 = vadd.f32 %v1337, %v1338
        %v1340 = vadd.f32 %v1263, %v1264
        %v1341 = vrot.slane %v1340, 4
        %v1342 = vadd.f32 %v1340, %v1341
        %v1343 = vrot.slane %v1342, 2
        %v1344 = vadd.f32 %v1342, %v1343
        %v1345 = vrot.slane %v1344, 1
        %v1346 = vadd.f32 %v1344, %v1345
        %v1347 = vadd.f32 %v1265, %v1266
        %v1348 = vrot.slane %v1347, 4
        %v1349 = vadd.f32 %v1347, %v1348
        %v1350 = vrot.slane %v1349, 2
        %v1351 = vadd.f32 %v1349, %v1350
        %v1352 = vrot.slane %v1351, 1
        %v1353 = vadd.f32 %v1351, %v1352
        %v1354 = vadd.f32 %v1267, %v1268
        %v1355 = vrot.slane %v1354, 4
        %v1356 = vadd.f32 %v1354, %v1355
        %v1357 = vrot.slane %v1356, 2
        %v1358 = vadd.f32 %v1356, %v1357
        %v1359 = vrot.slane %v1358, 1
        %v1360 = vadd.f32 %v1358, %v1359
        %v1361 = vadd.f32 %v1269, %v1270
        %v1362 = vrot.slane %v1361, 4
        %v1363 = vadd.f32 %v1361, %v1362
        %v1364 = vrot.slane %v1363, 2
        %v1365 = vadd.f32 %v1363, %v1364
        %v1366 = vrot.slane %v1365, 1
        %v1367 = vadd.f32 %v1365, %v1366
        %v1368 = vadd.f32 %v1271, %v1272
        %v1369 = vrot.slane %v1368, 4
        %v1370 = vadd.f32 %v1368, %v1369
        %v1371 = vrot.slane %v1370, 2
        %v1372 = vadd.f32 %v1370, %v1371
        %v1373 = vrot.slane %v1372, 1
        %v1374 = vadd.f32 %v1372, %v1373
        %v1375 = vadd.f32 %v1273, %v1274
        %v1376 = vrot.slane %v1375, 4
        %v1377 = vadd.f32 %v1375, %v1376
        %v1378 = vrot.slane %v1377, 2
        %v1379 = vadd.f32 %v1377, %v1378
        %v1380 = vrot.slane %v1379, 1
        %v1381 = vadd.f32 %v1379, %v1380
        %v1382 = vadd.f32 %v1275, %v1276
        %v1383 = vrot.slane %v1382, 4
        %v1384 = vadd.f32 %v1382, %v1383
        %v1385 = vrot.slane %v1384, 2
        %v1386 = vadd.f32 %v1384, %v1385
        %v1387 = vrot.slane %v1386, 1
        %v1388 = vadd.f32 %v1386, %v1387
        %v1389 = vrsqrt.pop %v1283
        %v1390 = vmul.f32 %v1389, %v1283
        %v1391 = vmul.f32 %v1390, %v1389
        %v1392 = vmul.f32 0.5, %v1391
        %v1393 = vsub.f32 1.5, %v1392
        %v1394 = vmul.f32 %v1389, %v1393
        %v1395 = vmul.f32 %v1283, %v1394
        %vm1396 = vcmp.eq.f32.partialorder %v1283, inf
        %v1397 = vsel %vm1396, %v1283, %v1395
        %vm1398 = vcmp.eq.f32.partialorder %v1283, 0.0
        %v1399 = vand.u32 %v1283, 2147483648
        %v1400 = vsel %vm1398, %v1399, %v1397
        %v1401 = vrsqrt.pop %v1290
        %v1402 = vmul.f32 %v1401, %v1290
        %v1403 = vmul.f32 %v1402, %v1401
        %v1404 = vmul.f32 0.5, %v1403
        %v1405 = vsub.f32 1.5, %v1404
        %v1406 = vmul.f32 %v1401, %v1405
        %v1407 = vmul.f32 %v1290, %v1406
        %vm1408 = vcmp.eq.f32.partialorder %v1290, inf
        %v1409 = vsel %vm1408, %v1290, %v1407
        %vm1410 = vcmp.eq.f32.partialorder %v1290, 0.0
        %v1411 = vand.u32 %v1290, 2147483648
        %v1412 = vsel %vm1410, %v1411, %v1409
        %v1413 = vrsqrt.pop %v1297
        %v1414 = vmul.f32 %v1413, %v1297
        %v1415 = vmul.f32 %v1414, %v1413
        %v1416 = vmul.f32 0.5, %v1415
        %v1417 = vsub.f32 1.5, %v1416
        %v1418 = vmul.f32 %v1413, %v1417
        %v1419 = vmul.f32 %v1297, %v1418
        %vm1420 = vcmp.eq.f32.partialorder %v1297, inf
        %v1421 = vsel %vm1420, %v1297, %v1419
        %vm1422 = vcmp.eq.f32.partialorder %v1297, 0.0
        %v1423 = vand.u32 %v1297, 2147483648
        %v1424 = vsel %vm1422, %v1423, %v1421
        %v1425 = vrsqrt.pop %v1304
        %v1426 = vmul.f32 %v1425, %v1304
        %v1427 = vmul.f32 %v1426, %v1425
        %v1428 = vmul.f32 0.5, %v1427
        %v1429 = vsub.f32 1.5, %v1428
        %v1430 = vmul.f32 %v1425, %v1429
        %v1431 = vmul.f32 %v1304, %v1430
        %vm1432 = vcmp.eq.f32.partialorder %v1304, inf
        %v1433 = vsel %vm1432, %v1304, %v1431
        %vm1434 = vcmp.eq.f32.partialorder %v1304, 0.0
        %v1435 = vand.u32 %v1304, 2147483648
        %v1436 = vsel %vm1434, %v1435, %v1433
        %v1437 = vrsqrt.pop %v1311
        %v1438 = vmul.f32 %v1437, %v1311
        %v1439 = vmul.f32 %v1438, %v1437
        %v1440 = vmul.f32 0.5, %v1439
        %v1441 = vsub.f32 1.5, %v1440
        %v1442 = vmul.f32 %v1437, %v1441
        %v1443 = vmul.f32 %v1311, %v1442
        %vm1444 = vcmp.eq.f32.partialorder %v1311, inf
        %v1445 = vsel %vm1444, %v1311, %v1443
        %vm1446 = vcmp.eq.f32.partialorder %v1311, 0.0
        %v1447 = vand.u32 %v1311, 2147483648
        %v1448 = vsel %vm1446, %v1447, %v1445
        %v1449 = vrsqrt.pop %v1318
        %v1450 = vmul.f32 %v1449, %v1318
        %v1451 = vmul.f32 %v1450, %v1449
        %v1452 = vmul.f32 0.5, %v1451
        %v1453 = vsub.f32 1.5, %v1452
        %v1454 = vmul.f32 %v1449, %v1453
        %v1455 = vmul.f32 %v1318, %v1454
        %vm1456 = vcmp.eq.f32.partialorder %v1318, inf
        %v1457 = vsel %vm1456, %v1318, %v1455
        %vm1458 = vcmp.eq.f32.partialorder %v1318, 0.0
        %v1459 = vand.u32 %v1318, 2147483648
        %v1460 = vsel %vm1458, %v1459, %v1457
        %v1461 = vrsqrt.pop %v1325
        %v1462 = vmul.f32 %v1461, %v1325
        %v1463 = vmul.f32 %v1462, %v1461
        %v1464 = vmul.f32 0.5, %v1463
        %v1465 = vsub.f32 1.5, %v1464
        %v1466 = vmul.f32 %v1461, %v1465
        %v1467 = vmul.f32 %v1325, %v1466
        %vm1468 = vcmp.eq.f32.partialorder %v1325, inf
        %v1469 = vsel %vm1468, %v1325, %v1467
        %vm1470 = vcmp.eq.f32.partialorder %v1325, 0.0
        %v1471 = vand.u32 %v1325, 2147483648
        %v1472 = vsel %vm1470, %v1471, %v1469
        %v1473 = vrsqrt.pop %v1332
        %v1474 = vmul.f32 %v1473, %v1332
        %v1475 = vmul.f32 %v1474, %v1473
        %v1476 = vmul.f32 0.5, %v1475
        %v1477 = vsub.f32 1.5, %v1476
        %v1478 = vmul.f32 %v1473, %v1477
        %v1479 = vmul.f32 %v1332, %v1478
        %vm1480 = vcmp.eq.f32.partialorder %v1332, inf
        %v1481 = vsel %vm1480, %v1332, %v1479
        %vm1482 = vcmp.eq.f32.partialorder %v1332, 0.0
        %v1483 = vand.u32 %v1332, 2147483648
        %v1484 = vsel %vm1482, %v1483, %v1481
        %v1485 = vrsqrt.pop %v1339
        %v1486 = vmul.f32 %v1485, %v1339
        %v1487 = vmul.f32 %v1486, %v1485
        %v1488 = vmul.f32 0.5, %v1487
        %v1489 = vsub.f32 1.5, %v1488
        %v1490 = vmul.f32 %v1485, %v1489
        %v1491 = vmul.f32 %v1339, %v1490
        %vm1492 = vcmp.eq.f32.partialorder %v1339, inf
        %v1493 = vsel %vm1492, %v1339, %v1491
        %vm1494 = vcmp.eq.f32.partialorder %v1339, 0.0
        %v1495 = vand.u32 %v1339, 2147483648
        %v1496 = vsel %vm1494, %v1495, %v1493
        %v1497 = vrsqrt.pop %v1346
        %v1498 = vmul.f32 %v1497, %v1346
        %v1499 = vmul.f32 %v1498, %v1497
        %v1500 = vmul.f32 0.5, %v1499
        %v1501 = vsub.f32 1.5, %v1500
        %v1502 = vmul.f32 %v1497, %v1501
        %v1503 = vmul.f32 %v1346, %v1502
        %vm1504 = vcmp.eq.f32.partialorder %v1346, inf
        %v1505 = vsel %vm1504, %v1346, %v1503
        %vm1506 = vcmp.eq.f32.partialorder %v1346, 0.0
        %v1507 = vand.u32 %v1346, 2147483648
        %v1508 = vsel %vm1506, %v1507, %v1505
        %v1509 = vrsqrt.pop %v1353
        %v1510 = vmul.f32 %v1509, %v1353
        %v1511 = vmul.f32 %v1510, %v1509
        %v1512 = vmul.f32 0.5, %v1511
        %v1513 = vsub.f32 1.5, %v1512
        %v1514 = vmul.f32 %v1509, %v1513
        %v1515 = vmul.f32 %v1353, %v1514
        %vm1516 = vcmp.eq.f32.partialorder %v1353, inf
        %v1517 = vsel %vm1516, %v1353, %v1515
        %vm1518 = vcmp.eq.f32.partialorder %v1353, 0.0
        %v1519 = vand.u32 %v1353, 2147483648
        %v1520 = vsel %vm1518, %v1519, %v1517
        %v1521 = vrsqrt.pop %v1360
        %v1522 = vmul.f32 %v1521, %v1360
        %v1523 = vmul.f32 %v1522, %v1521
        %v1524 = vmul.f32 0.5, %v1523
        %v1525 = vsub.f32 1.5, %v1524
        %v1526 = vmul.f32 %v1521, %v1525
        %v1527 = vmul.f32 %v1360, %v1526
        %vm1528 = vcmp.eq.f32.partialorder %v1360, inf
        %v1529 = vsel %vm1528, %v1360, %v1527
        %vm1530 = vcmp.eq.f32.partialorder %v1360, 0.0
        %v1531 = vand.u32 %v1360, 2147483648
        %v1532 = vsel %vm1530, %v1531, %v1529
        %v1533 = vrsqrt.pop %v1367
        %v1534 = vmul.f32 %v1533, %v1367
        %v1535 = vmul.f32 %v1534, %v1533
        %v1536 = vmul.f32 0.5, %v1535
        %v1537 = vsub.f32 1.5, %v1536
        %v1538 = vmul.f32 %v1533, %v1537
        %v1539 = vmul.f32 %v1367, %v1538
        %vm1540 = vcmp.eq.f32.partialorder %v1367, inf
        %v1541 = vsel %vm1540, %v1367, %v1539
        %vm1542 = vcmp.eq.f32.partialorder %v1367, 0.0
        %v1543 = vand.u32 %v1367, 2147483648
        %v1544 = vsel %vm1542, %v1543, %v1541
        %v1545 = vrsqrt.pop %v1374
        %v1546 = vmul.f32 %v1545, %v1374
        %v1547 = vmul.f32 %v1546, %v1545
        %v1548 = vmul.f32 0.5, %v1547
        %v1549 = vsub.f32 1.5, %v1548
        %v1550 = vmul.f32 %v1545, %v1549
        %v1551 = vmul.f32 %v1374, %v1550
        %vm1552 = vcmp.eq.f32.partialorder %v1374, inf
        %v1553 = vsel %vm1552, %v1374, %v1551
        %vm1554 = vcmp.eq.f32.partialorder %v1374, 0.0
        %v1555 = vand.u32 %v1374, 2147483648
        %v1556 = vsel %vm1554, %v1555, %v1553
        %v1557 = vrsqrt.pop %v1381
        %v1558 = vmul.f32 %v1557, %v1381
        %v1559 = vmul.f32 %v1558, %v1557
        %v1560 = vmul.f32 0.5, %v1559
        %v1561 = vsub.f32 1.5, %v1560
        %v1562 = vmul.f32 %v1557, %v1561
        %v1563 = vmul.f32 %v1381, %v1562
        %vm1564 = vcmp.eq.f32.partialorder %v1381, inf
        %v1565 = vsel %vm1564, %v1381, %v1563
        %vm1566 = vcmp.eq.f32.partialorder %v1381, 0.0
        %v1567 = vand.u32 %v1381, 2147483648
        %v1568 = vsel %vm1566, %v1567, %v1565
        %v1569 = vrsqrt.pop %v1388
        %v1570 = vmul.f32 %v1569, %v1388
        %v1571 = vmul.f32 %v1570, %v1569
        %v1572 = vmul.f32 0.5, %v1571
        %v1573 = vsub.f32 1.5, %v1572
        %v1574 = vmul.f32 %v1569, %v1573
        %v1575 = vmul.f32 %v1388, %v1574
        %vm1576 = vcmp.eq.f32.partialorder %v1388, inf
        %v1577 = vsel %vm1576, %v1388, %v1575
        %vm1578 = vcmp.eq.f32.partialorder %v1388, 0.0
        %v1579 = vand.u32 %v1388, 2147483648
        %v1580 = vsel %vm1578, %v1579, %v1577
        %v1581 = vld [vmem:[%s291] sm:$0xff]
        %v1582 = vld [vmem:[%s291 + $0x8] sm:$0xff]
        %1583 = vmatpush.msra.mxu0 %v408
        %1584 = vmatpush.msra.mxu0 %v407
        %1585 = vmatpush.msra.mxu0 %v406
        %1586 = vmatpush.msra.mxu0 %v405
        %1587 = vmatpush.msra.mxu0 %v404
        %1588 = vmatpush.msra.mxu0 %v403
        %1589 = vmatpush.msra.mxu0 %v402
        %1590 = vmatpush.msra.mxu0 %v401
        %1591 = vmatpush.msra.mxu0 %v400
        %1592 = vmatpush.msra.mxu0 %v399
        %1593 = vmatpush.msra.mxu0 %v398
        %1594 = vmatpush.msra.mxu0 %v397
        %1595 = vmatpush.msra.mxu0 %v396
        %1596 = vmatpush.msra.mxu0 %v395
        %1597 = vmatpush.msra.mxu0 %v394
        %1598 = vmatpush.msra.mxu0 %v393
        %1599 = vmatmul.f32.gmra.mxu0 %v1581
        %v1600 = vpop.f32.mrf.mxu0
        %v1601 = vadd.f32 0.0, %v1600
        %1602 = vmatmul.f32.gmra.mxu0 %v1582
        %v1603 = vpop.f32.mrf.mxu0
        %v1604 = vadd.f32 0.0, %v1603
        %1605 = vdwg.mxu0
        %v1606 = vmul.f32 %v1213, %v1601
        %v1607 = vmul.f32 %v1214, %v1604
        %v1608 = vmul.f32 %v1215, %v1601
        %v1609 = vmul.f32 %v1216, %v1604
        %v1610 = vmul.f32 %v1217, %v1601
        %v1611 = vmul.f32 %v1218, %v1604
        %v1612 = vmul.f32 %v1219, %v1601
        %v1613 = vmul.f32 %v1220, %v1604
        %v1614 = vmul.f32 %v1221, %v1601
        %v1615 = vmul.f32 %v1222, %v1604
        %v1616 = vmul.f32 %v1223, %v1601
        %v1617 = vmul.f32 %v1224, %v1604
        %v1618 = vmul.f32 %v1225, %v1601
        %v1619 = vmul.f32 %v1226, %v1604
        %v1620 = vmul.f32 %v1227, %v1601
        %v1621 = vmul.f32 %v1228, %v1604
        %v1622 = vmul.f32 %v1229, %v1601
        %v1623 = vmul.f32 %v1230, %v1604
        %v1624 = vmul.f32 %v1231, %v1601
        %v1625 = vmul.f32 %v1232, %v1604
        %v1626 = vmul.f32 %v1233, %v1601
        %v1627 = vmul.f32 %v1234, %v1604
        %v1628 = vmul.f32 %v1235, %v1601
        %v1629 = vmul.f32 %v1236, %v1604
        %v1630 = vmul.f32 %v1237, %v1601
        %v1631 = vmul.f32 %v1238, %v1604
        %v1632 = vmul.f32 %v1239, %v1601
        %v1633 = vmul.f32 %v1240, %v1604
        %v1634 = vmul.f32 %v1241, %v1601
        %v1635 = vmul.f32 %v1242, %v1604
        %v1636 = vmul.f32 %v1243, %v1601
        %v1637 = vmul.f32 %v1244, %v1604
        %v1638 = vadd.f32 %v1606, %v1607
        %v1639 = vrot.slane %v1638, 4
        %v1640 = vadd.f32 %v1638, %v1639
        %v1641 = vrot.slane %v1640, 2
        %v1642 = vadd.f32 %v1640, %v1641
        %v1643 = vrot.slane %v1642, 1
        %v1644 = vadd.f32 %v1642, %v1643
        %v1645 = vadd.f32 %v1608, %v1609
        %v1646 = vrot.slane %v1645, 4
        %v1647 = vadd.f32 %v1645, %v1646
        %v1648 = vrot.slane %v1647, 2
        %v1649 = vadd.f32 %v1647, %v1648
        %v1650 = vrot.slane %v1649, 1
        %v1651 = vadd.f32 %v1649, %v1650
        %v1652 = vadd.f32 %v1610, %v1611
        %v1653 = vrot.slane %v1652, 4
        %v1654 = vadd.f32 %v1652, %v1653
        %v1655 = vrot.slane %v1654, 2
        %v1656 = vadd.f32 %v1654, %v1655
        %v1657 = vrot.slane %v1656, 1
        %v1658 = vadd.f32 %v1656, %v1657
        %v1659 = vadd.f32 %v1612, %v1613
        %v1660 = vrot.slane %v1659, 4
        %v1661 = vadd.f32 %v1659, %v1660
        %v1662 = vrot.slane %v1661, 2
        %v1663 = vadd.f32 %v1661, %v1662
        %v1664 = vrot.slane %v1663, 1
        %v1665 = vadd.f32 %v1663, %v1664
        %v1666 = vadd.f32 %v1614, %v1615
        %v1667 = vrot.slane %v1666, 4
        %v1668 = vadd.f32 %v1666, %v1667
        %v1669 = vrot.slane %v1668, 2
        %v1670 = vadd.f32 %v1668, %v1669
        %v1671 = vrot.slane %v1670, 1
        %v1672 = vadd.f32 %v1670, %v1671
        %v1673 = vadd.f32 %v1616, %v1617
        %v1674 = vrot.slane %v1673, 4
        %v1675 = vadd.f32 %v1673, %v1674
        %v1676 = vrot.slane %v1675, 2
        %v1677 = vadd.f32 %v1675, %v1676
        %v1678 = vrot.slane %v1677, 1
        %v1679 = vadd.f32 %v1677, %v1678
        %v1680 = vadd.f32 %v1618, %v1619
        %v1681 = vrot.slane %v1680, 4
        %v1682 = vadd.f32 %v1680, %v1681
        %v1683 = vrot.slane %v1682, 2
        %v1684 = vadd.f32 %v1682, %v1683
        %v1685 = vrot.slane %v1684, 1
        %v1686 = vadd.f32 %v1684, %v1685
        %v1687 = vadd.f32 %v1620, %v1621
        %v1688 = vrot.slane %v1687, 4
        %v1689 = vadd.f32 %v1687, %v1688
        %v1690 = vrot.slane %v1689, 2
        %v1691 = vadd.f32 %v1689, %v1690
        %v1692 = vrot.slane %v1691, 1
        %v1693 = vadd.f32 %v1691, %v1692
        %v1694 = vadd.f32 %v1622, %v1623
        %v1695 = vrot.slane %v1694, 4
        %v1696 = vadd.f32 %v1694, %v1695
        %v1697 = vrot.slane %v1696, 2
        %v1698 = vadd.f32 %v1696, %v1697
        %v1699 = vrot.slane %v1698, 1
        %v1700 = vadd.f32 %v1698, %v1699
        %v1701 = vadd.f32 %v1624, %v1625
        %v1702 = vrot.slane %v1701, 4
        %v1703 = vadd.f32 %v1701, %v1702
        %v1704 = vrot.slane %v1703, 2
        %v1705 = vadd.f32 %v1703, %v1704
        %v1706 = vrot.slane %v1705, 1
        %v1707 = vadd.f32 %v1705, %v1706
        %v1708 = vadd.f32 %v1626, %v1627
        %v1709 = vrot.slane %v1708, 4
        %v1710 = vadd.f32 %v1708, %v1709
        %v1711 = vrot.slane %v1710, 2
        %v1712 = vadd.f32 %v1710, %v1711
        %v1713 = vrot.slane %v1712, 1
        %v1714 = vadd.f32 %v1712, %v1713
        %v1715 = vadd.f32 %v1628, %v1629
        %v1716 = vrot.slane %v1715, 4
        %v1717 = vadd.f32 %v1715, %v1716
        %v1718 = vrot.slane %v1717, 2
        %v1719 = vadd.f32 %v1717, %v1718
        %v1720 = vrot.slane %v1719, 1
        %v1721 = vadd.f32 %v1719, %v1720
        %v1722 = vadd.f32 %v1630, %v1631
        %v1723 = vrot.slane %v1722, 4
        %v1724 = vadd.f32 %v1722, %v1723
        %v1725 = vrot.slane %v1724, 2
        %v1726 = vadd.f32 %v1724, %v1725
        %v1727 = vrot.slane %v1726, 1
        %v1728 = vadd.f32 %v1726, %v1727
        %v1729 = vadd.f32 %v1632, %v1633
        %v1730 = vrot.slane %v1729, 4
        %v1731 = vadd.f32 %v1729, %v1730
        %v1732 = vrot.slane %v1731, 2
        %v1733 = vadd.f32 %v1731, %v1732
        %v1734 = vrot.slane %v1733, 1
        %v1735 = vadd.f32 %v1733, %v1734
        %v1736 = vadd.f32 %v1634, %v1635
        %v1737 = vrot.slane %v1736, 4
        %v1738 = vadd.f32 %v1736, %v1737
        %v1739 = vrot.slane %v1738, 2
        %v1740 = vadd.f32 %v1738, %v1739
        %v1741 = vrot.slane %v1740, 1
        %v1742 = vadd.f32 %v1740, %v1741
        %v1743 = vadd.f32 %v1636, %v1637
        %v1744 = vrot.slane %v1743, 4
        %v1745 = vadd.f32 %v1743, %v1744
        %v1746 = vrot.slane %v1745, 2
        %v1747 = vadd.f32 %v1745, %v1746
        %v1748 = vrot.slane %v1747, 1
        %v1749 = vadd.f32 %v1747, %v1748
        %v1750 = vmul.f32 %v1644, %v1400
        %v1751 = vmul.f32 %v1651, %v1412
        %v1752 = vmul.f32 %v1658, %v1424
        %v1753 = vmul.f32 %v1665, %v1436
        %v1754 = vmul.f32 %v1672, %v1448
        %v1755 = vmul.f32 %v1679, %v1460
        %v1756 = vmul.f32 %v1686, %v1472
        %v1757 = vmul.f32 %v1693, %v1484
        %v1758 = vmul.f32 %v1700, %v1496
        %v1759 = vmul.f32 %v1707, %v1508
        %v1760 = vmul.f32 %v1714, %v1520
        %v1761 = vmul.f32 %v1721, %v1532
        %v1762 = vmul.f32 %v1728, %v1544
        %v1763 = vmul.f32 %v1735, %v1556
        %v1764 = vmul.f32 %v1742, %v1568
        %v1765 = vmul.f32 %v1749, %v1580
        %vm1782 = vcmask 1041409
        %v1783 = vsel %vm1782, %v1751, %v1750
        %vm1784 = vcmask 1042434
        %v1785 = vsel %vm1784, %v1752, %v1783
        %vm1786 = vcmask 1043459
        %v1787 = vsel %vm1786, %v1753, %v1785
        %vm1788 = vcmask 1044484
        %v1789 = vsel %vm1788, %v1754, %v1787
        %vm1790 = vcmask 1045509
        %v1791 = vsel %vm1790, %v1755, %v1789
        %vm1792 = vcmask 1046534
        %v1793 = vsel %vm1792, %v1756, %v1791
        %vm1794 = vcmask 1047559
        %v1795 = vsel %vm1794, %v1757, %v1793
        %v1796 = vsel %vm1782, %v1759, %v1758
        %v1797 = vsel %vm1784, %v1760, %v1796
        %v1798 = vsel %vm1786, %v1761, %v1797
        %v1799 = vsel %vm1788, %v1762, %v1798
        %v1800 = vsel %vm1790, %v1763, %v1799
        %v1801 = vsel %vm1792, %v1764, %v1800
        %v1802 = vsel %vm1794, %v1765, %v1801
        %1805 = vmatpush.msra.mxu0 %v424
        %1806 = vmatpush.msra.mxu0 %v423
        %1807 = vmatpush.msra.mxu0 %v422
        %1808 = vmatpush.msra.mxu0 %v421
        %1809 = vmatpush.msra.mxu0 %v420
        %1810 = vmatpush.msra.mxu0 %v419
        %1811 = vmatpush.msra.mxu0 %v418
        %1812 = vmatpush.msra.mxu0 %v417
        %1813 = vmatpush.msra.mxu0 %v416
        %1814 = vmatpush.msra.mxu0 %v415
        %1815 = vmatpush.msra.mxu0 %v414
        %1816 = vmatpush.msra.mxu0 %v413
        %1817 = vmatpush.msra.mxu0 %v412
        %1818 = vmatpush.msra.mxu0 %v411
        %1819 = vmatpush.msra.mxu0 %v410
        %1820 = vmatpush.msra.mxu0 %v409
        %1821 = vmatmul.f32.gmra.mxu0 %v1795
        %v1822 = vpop.f32.mrf.mxu0
        %v1823 = vadd.f32 0.0, %v1822
        %1824 = vmatmul.f32.gmra.mxu0 %v1802
        %v1825 = vpop.f32.mrf.mxu0
        %v1826 = vadd.f32 0.0, %v1825
        %1827 = vdwg.mxu0
        %1828 = vst [vmem:[%s358] sm:$0xff] %v1823
        %1829 = vst [vmem:[%s358 + $0x8] sm:$0xff] %v1826
        %s1830 = scalar_lea.vmem %s291, 16 [#allocation2]
        %v1831 = vld [vmem:[%s1830] sm:$0xff]
        %v1832 = vld [vmem:[%s1830 + $0x8] sm:$0xff]
        %1833 = vmatpush.msra.mxu0 %v408
        %1834 = vmatpush.msra.mxu0 %v407
        %1835 = vmatpush.msra.mxu0 %v406
        %1836 = vmatpush.msra.mxu0 %v405
        %1837 = vmatpush.msra.mxu0 %v404
        %1838 = vmatpush.msra.mxu0 %v403
        %1839 = vmatpush.msra.mxu0 %v402
        %1840 = vmatpush.msra.mxu0 %v401
        %1841 = vmatpush.msra.mxu0 %v400
        %1842 = vmatpush.msra.mxu0 %v399
        %1843 = vmatpush.msra.mxu0 %v398
        %1844 = vmatpush.msra.mxu0 %v397
        %1845 = vmatpush.msra.mxu0 %v396
        %1846 = vmatpush.msra.mxu0 %v395
        %1847 = vmatpush.msra.mxu0 %v394
        %1848 = vmatpush.msra.mxu0 %v393
        %1849 = vmatmul.f32.gmra.mxu0 %v1831
        %v1850 = vpop.f32.mrf.mxu0
        %v1851 = vadd.f32 0.0, %v1850
        %1852 = vmatmul.f32.gmra.mxu0 %v1832
        %v1853 = vpop.f32.mrf.mxu0
        %v1854 = vadd.f32 0.0, %v1853
        %1855 = vdwg.mxu0
        %v1856 = vmul.f32 %v1213, %v1851
        %v1857 = vmul.f32 %v1214, %v1854
        %v1858 = vmul.f32 %v1215, %v1851
        %v1859 = vmul.f32 %v1216, %v1854
        %v1860 = vmul.f32 %v1217, %v1851
        %v1861 = vmul.f32 %v1218, %v1854
        %v1862 = vmul.f32 %v1219, %v1851
        %v1863 = vmul.f32 %v1220, %v1854
        %v1864 = vmul.f32 %v1221, %v1851
        %v1865 = vmul.f32 %v1222, %v1854
        %v1866 = vmul.f32 %v1223, %v1851
        %v1867 = vmul.f32 %v1224, %v1854
        %v1868 = vmul.f32 %v1225, %v1851
        %v1869 = vmul.f32 %v1226, %v1854
        %v1870 = vmul.f32 %v1227, %v1851
        %v1871 = vmul.f32 %v1228, %v1854
        %v1872 = vmul.f32 %v1229, %v1851
        %v1873 = vmul.f32 %v1230, %v1854
        %v1874 = vmul.f32 %v1231, %v1851
        %v1875 = vmul.f32 %v1232, %v1854
        %v1876 = vmul.f32 %v1233, %v1851
        %v1877 = vmul.f32 %v1234, %v1854
        %v1878 = vmul.f32 %v1235, %v1851
        %v1879 = vmul.f32 %v1236, %v1854
        %v1880 = vmul.f32 %v1237, %v1851
        %v1881 = vmul.f32 %v1238, %v1854
        %v1882 = vmul.f32 %v1239, %v1851
        %v1883 = vmul.f32 %v1240, %v1854
        %v1884 = vmul.f32 %v1241, %v1851
        %v1885 = vmul.f32 %v1242, %v1854
        %v1886 = vmul.f32 %v1243, %v1851
        %v1887 = vmul.f32 %v1244, %v1854
        %v1888 = vadd.f32 %v1856, %v1857
        %v1889 = vrot.slane %v1888, 4
        %v1890 = vadd.f32 %v1888, %v1889
        %v1891 = vrot.slane %v1890, 2
        %v1892 = vadd.f32 %v1890, %v1891
        %v1893 = vrot.slane %v1892, 1
        %v1894 = vadd.f32 %v1892, %v1893
        %v1895 = vadd.f32 %v1858, %v1859
        %v1896 = vrot.slane %v1895, 4
        %v1897 = vadd.f32 %v1895, %v1896
        %v1898 = vrot.slane %v1897, 2
        %v1899 = vadd.f32 %v1897, %v1898
        %v1900 = vrot.slane %v1899, 1
        %v1901 = vadd.f32 %v1899, %v1900
        %v1902 = vadd.f32 %v1860, %v1861
        %v1903 = vrot.slane %v1902, 4
        %v1904 = vadd.f32 %v1902, %v1903
        %v1905 = vrot.slane %v1904, 2
        %v1906 = vadd.f32 %v1904, %v1905
        %v1907 = vrot.slane %v1906, 1
        %v1908 = vadd.f32 %v1906, %v1907
        %v1909 = vadd.f32 %v1862, %v1863
        %v1910 = vrot.slane %v1909, 4
        %v1911 = vadd.f32 %v1909, %v1910
        %v1912 = vrot.slane %v1911, 2
        %v1913 = vadd.f32 %v1911, %v1912
        %v1914 = vrot.slane %v1913, 1
        %v1915 = vadd.f32 %v1913, %v1914
        %v1916 = vadd.f32 %v1864, %v1865
        %v1917 = vrot.slane %v1916, 4
        %v1918 = vadd.f32 %v1916, %v1917
        %v1919 = vrot.slane %v1918, 2
        %v1920 = vadd.f32 %v1918, %v1919
        %v1921 = vrot.slane %v1920, 1
        %v1922 = vadd.f32 %v1920, %v1921
        %v1923 = vadd.f32 %v1866, %v1867
        %v1924 = vrot.slane %v1923, 4
        %v1925 = vadd.f32 %v1923, %v1924
        %v1926 = vrot.slane %v1925, 2
        %v1927 = vadd.f32 %v1925, %v1926
        %v1928 = vrot.slane %v1927, 1
        %v1929 = vadd.f32 %v1927, %v1928
        %v1930 = vadd.f32 %v1868, %v1869
        %v1931 = vrot.slane %v1930, 4
        %v1932 = vadd.f32 %v1930, %v1931
        %v1933 = vrot.slane %v1932, 2
        %v1934 = vadd.f32 %v1932, %v1933
        %v1935 = vrot.slane %v1934, 1
        %v1936 = vadd.f32 %v1934, %v1935
        %v1937 = vadd.f32 %v1870, %v1871
        %v1938 = vrot.slane %v1937, 4
        %v1939 = vadd.f32 %v1937, %v1938
        %v1940 = vrot.slane %v1939, 2
        %v1941 = vadd.f32 %v1939, %v1940
        %v1942 = vrot.slane %v1941, 1
        %v1943 = vadd.f32 %v1941, %v1942
        %v1944 = vadd.f32 %v1872, %v1873
        %v1945 = vrot.slane %v1944, 4
        %v1946 = vadd.f32 %v1944, %v1945
        %v1947 = vrot.slane %v1946, 2
        %v1948 = vadd.f32 %v1946, %v1947
        %v1949 = vrot.slane %v1948, 1
        %v1950 = vadd.f32 %v1948, %v1949
        %v1951 = vadd.f32 %v1874, %v1875
        %v1952 = vrot.slane %v1951, 4
        %v1953 = vadd.f32 %v1951, %v1952
        %v1954 = vrot.slane %v1953, 2
        %v1955 = vadd.f32 %v1953, %v1954
        %v1956 = vrot.slane %v1955, 1
        %v1957 = vadd.f32 %v1955, %v1956
        %v1958 = vadd.f32 %v1876, %v1877
        %v1959 = vrot.slane %v1958, 4
        %v1960 = vadd.f32 %v1958, %v1959
        %v1961 = vrot.slane %v1960, 2
        %v1962 = vadd.f32 %v1960, %v1961
        %v1963 = vrot.slane %v1962, 1
        %v1964 = vadd.f32 %v1962, %v1963
        %v1965 = vadd.f32 %v1878, %v1879
        %v1966 = vrot.slane %v1965, 4
        %v1967 = vadd.f32 %v1965, %v1966
        %v1968 = vrot.slane %v1967, 2
        %v1969 = vadd.f32 %v1967, %v1968
        %v1970 = vrot.slane %v1969, 1
        %v1971 = vadd.f32 %v1969, %v1970
        %v1972 = vadd.f32 %v1880, %v1881
        %v1973 = vrot.slane %v1972, 4
        %v1974 = vadd.f32 %v1972, %v1973
        %v1975 = vrot.slane %v1974, 2
        %v1976 = vadd.f32 %v1974, %v1975
        %v1977 = vrot.slane %v1976, 1
        %v1978 = vadd.f32 %v1976, %v1977
        %v1979 = vadd.f32 %v1882, %v1883
        %v1980 = vrot.slane %v1979, 4
        %v1981 = vadd.f32 %v1979, %v1980
        %v1982 = vrot.slane %v1981, 2
        %v1983 = vadd.f32 %v1981, %v1982
        %v1984 = vrot.slane %v1983, 1
        %v1985 = vadd.f32 %v1983, %v1984
        %v1986 = vadd.f32 %v1884, %v1885
        %v1987 = vrot.slane %v1986, 4
        %v1988 = vadd.f32 %v1986, %v1987
        %v1989 = vrot.slane %v1988, 2
        %v1990 = vadd.f32 %v1988, %v1989
        %v1991 = vrot.slane %v1990, 1
        %v1992 = vadd.f32 %v1990, %v1991
        %v1993 = vadd.f32 %v1886, %v1887
        %v1994 = vrot.slane %v1993, 4
        %v1995 = vadd.f32 %v1993, %v1994
        %v1996 = vrot.slane %v1995, 2
        %v1997 = vadd.f32 %v1995, %v1996
        %v1998 = vrot.slane %v1997, 1
        %v1999 = vadd.f32 %v1997, %v1998
        %v2000 = vmul.f32 %v1894, %v1400
        %v2001 = vmul.f32 %v1901, %v1412
        %v2002 = vmul.f32 %v1908, %v1424
        %v2003 = vmul.f32 %v1915, %v1436
        %v2004 = vmul.f32 %v1922, %v1448
        %v2005 = vmul.f32 %v1929, %v1460
        %v2006 = vmul.f32 %v1936, %v1472
        %v2007 = vmul.f32 %v1943, %v1484
        %v2008 = vmul.f32 %v1950, %v1496
        %v2009 = vmul.f32 %v1957, %v1508
        %v2010 = vmul.f32 %v1964, %v1520
        %v2011 = vmul.f32 %v1971, %v1532
        %v2012 = vmul.f32 %v1978, %v1544
        %v2013 = vmul.f32 %v1985, %v1556
        %v2014 = vmul.f32 %v1992, %v1568
        %v2015 = vmul.f32 %v1999, %v1580
        %v2032 = vsel %vm1782, %v2001, %v2000
        %v2033 = vsel %vm1784, %v2002, %v2032
        %v2034 = vsel %vm1786, %v2003, %v2033
        %v2035 = vsel %vm1788, %v2004, %v2034
        %v2036 = vsel %vm1790, %v2005, %v2035
        %v2037 = vsel %vm1792, %v2006, %v2036
        %v2038 = vsel %vm1794, %v2007, %v2037
        %v2039 = vsel %vm1782, %v2009, %v2008
        %v2040 = vsel %vm1784, %v2010, %v2039
        %v2041 = vsel %vm1786, %v2011, %v2040
        %v2042 = vsel %vm1788, %v2012, %v2041
        %v2043 = vsel %vm1790, %v2013, %v2042
        %v2044 = vsel %vm1792, %v2014, %v2043
        %v2045 = vsel %vm1794, %v2015, %v2044
        %2048 = vmatpush.msra.mxu0 %v424
        %2049 = vmatpush.msra.mxu0 %v423
        %2050 = vmatpush.msra.mxu0 %v422
        %2051 = vmatpush.msra.mxu0 %v421
        %2052 = vmatpush.msra.mxu0 %v420
        %2053 = vmatpush.msra.mxu0 %v419
        %2054 = vmatpush.msra.mxu0 %v418
        %2055 = vmatpush.msra.mxu0 %v417
        %2056 = vmatpush.msra.mxu0 %v416
        %2057 = vmatpush.msra.mxu0 %v415
        %2058 = vmatpush.msra.mxu0 %v414
        %2059 = vmatpush.msra.mxu0 %v413
        %2060 = vmatpush.msra.mxu0 %v412
        %2061 = vmatpush.msra.mxu0 %v411
        %2062 = vmatpush.msra.mxu0 %v410
        %2063 = vmatpush.msra.mxu0 %v409
        %2064 = vmatmul.f32.gmra.mxu0 %v2038
        %v2065 = vpop.f32.mrf.mxu0
        %v2066 = vadd.f32 0.0, %v2065
        %2067 = vmatmul.f32.gmra.mxu0 %v2045
        %v2068 = vpop.f32.mrf.mxu0
        %v2069 = vadd.f32 0.0, %v2068
        %2070 = vdwg.mxu0
        %s2071 = scalar_lea.vmem %s358, 16 [#allocation11]
        %2072 = vst [vmem:[%s2071] sm:$0xff] %v2066
        %2073 = vst [vmem:[%s2071 + $0x8] sm:$0xff] %v2069
        %s2074 = scalar_lea.vmem %s291, 32 [#allocation2]
        %v2075 = vld [vmem:[%s2074] sm:$0xff]
        %v2076 = vld [vmem:[%s2074 + $0x8] sm:$0xff]
        %2077 = vmatpush.msra.mxu0 %v408
        %2078 = vmatpush.msra.mxu0 %v407
        %2079 = vmatpush.msra.mxu0 %v406
        %2080 = vmatpush.msra.mxu0 %v405
        %2081 = vmatpush.msra.mxu0 %v404
        %2082 = vmatpush.msra.mxu0 %v403
        %2083 = vmatpush.msra.mxu0 %v402
        %2084 = vmatpush.msra.mxu0 %v401
        %2085 = vmatpush.msra.mxu0 %v400
        %2086 = vmatpush.msra.mxu0 %v399
        %2087 = vmatpush.msra.mxu0 %v398
        %2088 = vmatpush.msra.mxu0 %v397
        %2089 = vmatpush.msra.mxu0 %v396
        %2090 = vmatpush.msra.mxu0 %v395
        %2091 = vmatpush.msra.mxu0 %v394
        %2092 = vmatpush.msra.mxu0 %v393
        %2093 = vmatmul.f32.gmra.mxu0 %v2075
        %v2094 = vpop.f32.mrf.mxu0
        %v2095 = vadd.f32 0.0, %v2094
        %2096 = vmatmul.f32.gmra.mxu0 %v2076
        %v2097 = vpop.f32.mrf.mxu0
        %v2098 = vadd.f32 0.0, %v2097
        %2099 = vdwg.mxu0
        %v2100 = vmul.f32 %v1213, %v2095
        %v2101 = vmul.f32 %v1214, %v2098
        %v2102 = vmul.f32 %v1215, %v2095
        %v2103 = vmul.f32 %v1216, %v2098
        %v2104 = vmul.f32 %v1217, %v2095
        %v2105 = vmul.f32 %v1218, %v2098
        %v2106 = vmul.f32 %v1219, %v2095
        %v2107 = vmul.f32 %v1220, %v2098
        %v2108 = vmul.f32 %v1221, %v2095
        %v2109 = vmul.f32 %v1222, %v2098
        %v2110 = vmul.f32 %v1223, %v2095
        %v2111 = vmul.f32 %v1224, %v2098
        %v2112 = vmul.f32 %v1225, %v2095
        %v2113 = vmul.f32 %v1226, %v2098
        %v2114 = vmul.f32 %v1227, %v2095
        %v2115 = vmul.f32 %v1228, %v2098
        %v2116 = vmul.f32 %v1229, %v2095
        %v2117 = vmul.f32 %v1230, %v2098
        %v2118 = vmul.f32 %v1231, %v2095
        %v2119 = vmul.f32 %v1232, %v2098
        %v2120 = vmul.f32 %v1233, %v2095
        %v2121 = vmul.f32 %v1234, %v2098
        %v2122 = vmul.f32 %v1235, %v2095
        %v2123 = vmul.f32 %v1236, %v2098
        %v2124 = vmul.f32 %v1237, %v2095
        %v2125 = vmul.f32 %v1238, %v2098
        %v2126 = vmul.f32 %v1239, %v2095
        %v2127 = vmul.f32 %v1240, %v2098
        %v2128 = vmul.f32 %v1241, %v2095
        %v2129 = vmul.f32 %v1242, %v2098
        %v2130 = vmul.f32 %v1243, %v2095
        %v2131 = vmul.f32 %v1244, %v2098
        %v2132 = vadd.f32 %v2100, %v2101
        %v2133 = vrot.slane %v2132, 4
        %v2134 = vadd.f32 %v2132, %v2133
        %v2135 = vrot.slane %v2134, 2
        %v2136 = vadd.f32 %v2134, %v2135
        %v2137 = vrot.slane %v2136, 1
        %v2138 = vadd.f32 %v2136, %v2137
        %v2139 = vadd.f32 %v2102, %v2103
        %v2140 = vrot.slane %v2139, 4
        %v2141 = vadd.f32 %v2139, %v2140
        %v2142 = vrot.slane %v2141, 2
        %v2143 = vadd.f32 %v2141, %v2142
        %v2144 = vrot.slane %v2143, 1
        %v2145 = vadd.f32 %v2143, %v2144
        %v2146 = vadd.f32 %v2104, %v2105
        %v2147 = vrot.slane %v2146, 4
        %v2148 = vadd.f32 %v2146, %v2147
        %v2149 = vrot.slane %v2148, 2
        %v2150 = vadd.f32 %v2148, %v2149
        %v2151 = vrot.slane %v2150, 1
        %v2152 = vadd.f32 %v2150, %v2151
        %v2153 = vadd.f32 %v2106, %v2107
        %v2154 = vrot.slane %v2153, 4
        %v2155 = vadd.f32 %v2153, %v2154
        %v2156 = vrot.slane %v2155, 2
        %v2157 = vadd.f32 %v2155, %v2156
        %v2158 = vrot.slane %v2157, 1
        %v2159 = vadd.f32 %v2157, %v2158
        %v2160 = vadd.f32 %v2108, %v2109
        %v2161 = vrot.slane %v2160, 4
        %v2162 = vadd.f32 %v2160, %v2161
        %v2163 = vrot.slane %v2162, 2
        %v2164 = vadd.f32 %v2162, %v2163
        %v2165 = vrot.slane %v2164, 1
        %v2166 = vadd.f32 %v2164, %v2165
        %v2167 = vadd.f32 %v2110, %v2111
        %v2168 = vrot.slane %v2167, 4
        %v2169 = vadd.f32 %v2167, %v2168
        %v2170 = vrot.slane %v2169, 2
        %v2171 = vadd.f32 %v2169, %v2170
        %v2172 = vrot.slane %v2171, 1
        %v2173 = vadd.f32 %v2171, %v2172
        %v2174 = vadd.f32 %v2112, %v2113
        %v2175 = vrot.slane %v2174, 4
        %v2176 = vadd.f32 %v2174, %v2175
        %v2177 = vrot.slane %v2176, 2
        %v2178 = vadd.f32 %v2176, %v2177
        %v2179 = vrot.slane %v2178, 1
        %v2180 = vadd.f32 %v2178, %v2179
        %v2181 = vadd.f32 %v2114, %v2115
        %v2182 = vrot.slane %v2181, 4
        %v2183 = vadd.f32 %v2181, %v2182
        %v2184 = vrot.slane %v2183, 2
        %v2185 = vadd.f32 %v2183, %v2184
        %v2186 = vrot.slane %v2185, 1
        %v2187 = vadd.f32 %v2185, %v2186
        %v2188 = vadd.f32 %v2116, %v2117
        %v2189 = vrot.slane %v2188, 4
        %v2190 = vadd.f32 %v2188, %v2189
        %v2191 = vrot.slane %v2190, 2
        %v2192 = vadd.f32 %v2190, %v2191
        %v2193 = vrot.slane %v2192, 1
        %v2194 = vadd.f32 %v2192, %v2193
        %v2195 = vadd.f32 %v2118, %v2119
        %v2196 = vrot.slane %v2195, 4
        %v2197 = vadd.f32 %v2195, %v2196
        %v2198 = vrot.slane %v2197, 2
        %v2199 = vadd.f32 %v2197, %v2198
        %v2200 = vrot.slane %v2199, 1
        %v2201 = vadd.f32 %v2199, %v2200
        %v2202 = vadd.f32 %v2120, %v2121
        %v2203 = vrot.slane %v2202, 4
        %v2204 = vadd.f32 %v2202, %v2203
        %v2205 = vrot.slane %v2204, 2
        %v2206 = vadd.f32 %v2204, %v2205
        %v2207 = vrot.slane %v2206, 1
        %v2208 = vadd.f32 %v2206, %v2207
        %v2209 = vadd.f32 %v2122, %v2123
        %v2210 = vrot.slane %v2209, 4
        %v2211 = vadd.f32 %v2209, %v2210
        %v2212 = vrot.slane %v2211, 2
        %v2213 = vadd.f32 %v2211, %v2212
        %v2214 = vrot.slane %v2213, 1
        %v2215 = vadd.f32 %v2213, %v2214
        %v2216 = vadd.f32 %v2124, %v2125
        %v2217 = vrot.slane %v2216, 4
        %v2218 = vadd.f32 %v2216, %v2217
        %v2219 = vrot.slane %v2218, 2
        %v2220 = vadd.f32 %v2218, %v2219
        %v2221 = vrot.slane %v2220, 1
        %v2222 = vadd.f32 %v2220, %v2221
        %v2223 = vadd.f32 %v2126, %v2127
        %v2224 = vrot.slane %v2223, 4
        %v2225 = vadd.f32 %v2223, %v2224
        %v2226 = vrot.slane %v2225, 2
        %v2227 = vadd.f32 %v2225, %v2226
        %v2228 = vrot.slane %v2227, 1
        %v2229 = vadd.f32 %v2227, %v2228
        %v2230 = vadd.f32 %v2128, %v2129
        %v2231 = vrot.slane %v2230, 4
        %v2232 = vadd.f32 %v2230, %v2231
        %v2233 = vrot.slane %v2232, 2
        %v2234 = vadd.f32 %v2232, %v2233
        %v2235 = vrot.slane %v2234, 1
        %v2236 = vadd.f32 %v2234, %v2235
        %v2237 = vadd.f32 %v2130, %v2131
        %v2238 = vrot.slane %v2237, 4
        %v2239 = vadd.f32 %v2237, %v2238
        %v2240 = vrot.slane %v2239, 2
        %v2241 = vadd.f32 %v2239, %v2240
        %v2242 = vrot.slane %v2241, 1
        %v2243 = vadd.f32 %v2241, %v2242
        %v2244 = vmul.f32 %v2138, %v1400
        %v2245 = vmul.f32 %v2145, %v1412
        %v2246 = vmul.f32 %v2152, %v1424
        %v2247 = vmul.f32 %v2159, %v1436
        %v2248 = vmul.f32 %v2166, %v1448
        %v2249 = vmul.f32 %v2173, %v1460
        %v2250 = vmul.f32 %v2180, %v1472
        %v2251 = vmul.f32 %v2187, %v1484
        %v2252 = vmul.f32 %v2194, %v1496
        %v2253 = vmul.f32 %v2201, %v1508
        %v2254 = vmul.f32 %v2208, %v1520
        %v2255 = vmul.f32 %v2215, %v1532
        %v2256 = vmul.f32 %v2222, %v1544
        %v2257 = vmul.f32 %v2229, %v1556
        %v2258 = vmul.f32 %v2236, %v1568
        %v2259 = vmul.f32 %v2243, %v1580
        %v2276 = vsel %vm1782, %v2245, %v2244
        %v2277 = vsel %vm1784, %v2246, %v2276
        %v2278 = vsel %vm1786, %v2247, %v2277
        %v2279 = vsel %vm1788, %v2248, %v2278
        %v2280 = vsel %vm1790, %v2249, %v2279
        %v2281 = vsel %vm1792, %v2250, %v2280
        %v2282 = vsel %vm1794, %v2251, %v2281
        %v2283 = vsel %vm1782, %v2253, %v2252
        %v2284 = vsel %vm1784, %v2254, %v2283
        %v2285 = vsel %vm1786, %v2255, %v2284
        %v2286 = vsel %vm1788, %v2256, %v2285
        %v2287 = vsel %vm1790, %v2257, %v2286
        %v2288 = vsel %vm1792, %v2258, %v2287
        %v2289 = vsel %vm1794, %v2259, %v2288
        %2292 = vmatpush.msra.mxu0 %v424
        %2293 = vmatpush.msra.mxu0 %v423
        %2294 = vmatpush.msra.mxu0 %v422
        %2295 = vmatpush.msra.mxu0 %v421
        %2296 = vmatpush.msra.mxu0 %v420
        %2297 = vmatpush.msra.mxu0 %v419
        %2298 = vmatpush.msra.mxu0 %v418
        %2299 = vmatpush.msra.mxu0 %v417
        %2300 = vmatpush.msra.mxu0 %v416
        %2301 = vmatpush.msra.mxu0 %v415
        %2302 = vmatpush.msra.mxu0 %v414
        %2303 = vmatpush.msra.mxu0 %v413
        %2304 = vmatpush.msra.mxu0 %v412
        %2305 = vmatpush.msra.mxu0 %v411
        %2306 = vmatpush.msra.mxu0 %v410
        %2307 = vmatpush.msra.mxu0 %v409
        %2308 = vmatmul.f32.gmra.mxu0 %v2282
        %v2309 = vpop.f32.mrf.mxu0
        %v2310 = vadd.f32 0.0, %v2309
        %2311 = vmatmul.f32.gmra.mxu0 %v2289
        %v2312 = vpop.f32.mrf.mxu0
        %v2313 = vadd.f32 0.0, %v2312
        %2314 = vdwg.mxu0
        %s2315 = scalar_lea.vmem %s358, 32 [#allocation11]
        %2316 = vst [vmem:[%s2315] sm:$0xff] %v2310
        %2317 = vst [vmem:[%s2315 + $0x8] sm:$0xff] %v2313
        %s2318 = sand.u32 %s154, 1
        %s2319 = scalar_lea.sflag [#allocation4], %s2318
        %s2320 = sand.u32 %s154, 1
        %s2321 = smul.addr %s2320, 48
        %s2322 = scalar_lea.vmem [#allocation11], %s2321
        // Predicated region
        $region61: #{tpu_custom_call.1} parent=39 // pred_check
          %p2323 = pneg %p164
        $region62: #{tpu_custom_call.1} parent=39 // pred_check_branch
          %2325 = sbr.rel (%p2323) target = $region64
        $region63: #{tpu_custom_call.1} parent=39 // pred_region
          %2327 = vsyncadd %s2319, 0
          %s2328 = smul.addr %s26, 6
          %s2329 = smul.addr %s2328, 8
          %s2330 = scalar_lea.hbm %s5, %s2329
          %s2331 = sshll.u32 %s2322, 4
          %s2332 = int_to_ptr.vmem [resolvable:$true] %s2331
          %s2333 = sshll.u32 %s2330, 4
          %s2334 = int_to_ptr.hbm [resolvable:$true] %s2333
          %2339 = dma.vmem_to_hbm [thread:$0]  %s2332, 768, %s2334, %s2319, 128, 128, 8
        $region64: #{tpu_custom_call.1} parent=39 // pred_fallthru
          _
      $region40: #{tpu_custom_call.1} parent=5 // pred_fallthru
        _
      %p2340 = scmp.le.s32.totalorder 2, %s21
      // Predicated region
      $region65: #{tpu_custom_call.1} parent=5 // pred_check
        %p2341 = pneg %p2340
      $region66: #{tpu_custom_call.1} parent=5 // pred_check_branch
        %2343 = sbr.rel (%p2341) target = $region68
      $region67: #{tpu_custom_call.1} parent=5 // pred_region
        %s2344 = ssub.s32 %s21, 2
        // Predicated region
        $region69: #{tpu_custom_call.1} parent=67 // pred_check
          %p2345 = pneg %p170
        $region70: #{tpu_custom_call.1} parent=67 // pred_check_branch
          %2347 = sbr.rel (%p2345) target = $region72
        $region71: #{tpu_custom_call.1} parent=67 // pred_region
          %s2348 = sand.u32 %s155, 1
          %s2349 = scalar_lea.sflag [#allocation4], %s2348
          %s2350 = sand.u32 %s155, 1
          %s2351 = smul.addr %s2350, 48
          %s2352 = scalar_lea.vmem [#allocation11], %s2351
          %2354 = dma.done %s2349, 768
        $region72: #{tpu_custom_call.1} parent=67 // pred_fallthru
          _
      $region68: #{tpu_custom_call.1} parent=5 // pred_fallthru
        _
    $region6: #{tpu_custom_call.1} parent=1 // loop_footer
      %s25 = sadd.s32 1, %s21
    $region7: #{tpu_custom_call.1} parent=1 // loop_footer_branch
      %20 = sbr.rel target = $region3
    $region8: #{tpu_custom_call.1} parent=1 // loop_exit
      _
    %2355 = vsyncpa [#allocation3], 1
    %s2356 = scalar_lea.sflag [#allocation3], 1
    %2357 = vsyncpa %s2356, 1
    %2358 = vsyncpa [#allocation6], 1
    %s2359 = scalar_lea.sflag [#allocation6], 1
    %2360 = vsyncpa %s2359, 1
    %2361 = vsyncpa [#allocation9], 1
    %2362 = vsyncpa [#allocation4], 1
    %s2363 = scalar_lea.sflag [#allocation4], 1
    %2364 = vsyncpa %s2363, 1

</llo_original>
